<compile_context>
chip_gen: v6e
topology: v6e:2x2x1
jax: 0.10.0
libtpu: 0.0.40
codegen_flags: <defaults>
</compile_context>

<pallas_src>
import functools

import numpy as np

import jax
import jax.numpy as jnp
from jax.experimental import pallas as pl
from jax.experimental.pallas import tpu as pltpu


def _round_up(x, m):
    return (x + m - 1) // m * m


# ----------------------------- Pallas kernel ------------------------------- #

def _mynet_fused_kernel(x_ref, w1_ref, w2_ref, w3_ref, pw1_ref, o_ref):
    """One batch tile: folded conv stack as MXU matmuls + in-kernel log_softmax.

    x_ref  : (bt, 784) VMEM  raw 28x28 images, batch on sublanes, pixels on lanes
    w1_ref : (784, 81) VMEM  dw1 3x3/s3 stencil scattered per output position
    w2_ref : (3, 81, 54) VMEM  per-c1: pw2*dw2, block-diagonal over the 3x3 grid
    w3_ref : (54, 10) VMEM   pw3*dw3 (full contraction)
    pw1_ref: (3,)   SMEM     pw1 channel scalars (applied between ReLU stages)
    o_ref  : (bt, 10) VMEM   log-probabilities
    """
    x = x_ref[...]                                                    # (bt, 784)

    # Layer 1 depthwise conv (shared single channel) as one MXU matmul.
    s = jnp.dot(x, w1_ref[...], preferred_element_type=jnp.float32)  # (bt, 81)

    # Layer 1 pointwise + ReLU fused with layer 2 (dw2 + pw2) on the MXU,
    # summing the 3 intermediate channels.
    acc = None
    for c1 in range(3):
        y1 = jnp.maximum(s * pw1_ref[c1], 0.0)                        # (bt, 81) VPU
        t = jnp.dot(y1, w2_ref[c1], preferred_element_type=jnp.float32)  # (bt, 54)
        acc = t if acc is None else acc + t
    y2 = jnp.maximum(acc, 0.0)                                        # (bt, 54)

    # Layer 3 (dw3 + pw3) + ReLU on the MXU.
    z = jnp.maximum(
        jnp.dot(y2, w3_ref[...], preferred_element_type=jnp.float32), 0.0)  # (bt, 10)

    # Numerically-stable log_softmax over the 10 classes (lane axis).
    zc = z - jnp.max(z, axis=1, keepdims=True)
    o_ref[...] = zc - jnp.log(jnp.sum(jnp.exp(zc), axis=1, keepdims=True))


# ------------------------------- JAX glue ---------------------------------- #

def _fold_weights(p):
    """Fold the six Conv2d weights into three small dense matmul matrices.

    Column/row orderings:
      conv1 output position p1 = row9*9 + col9          (row9, col9 in 0..8)
      conv2 output position q  = qi*3 + qj               (qi, qj in 0..2)
      W2/W3 inner axis index   = c2*9 + q
    """
    f32 = jnp.float32
    dw1 = p["w_dw1"][0, 0].astype(f32)                  # (3, 3)
    pw1 = p["w_pw1"][:, 0, 0, 0].astype(f32)            # (3,)
    dw2 = p["w_dw2"][:, 0].reshape(3, 9).astype(f32)    # (c1, ri*3+rj)
    pw2 = p["w_pw2"][:, :, 0, 0].astype(f32)            # (c2, c1)
    dw3 = p["w_dw3"][:, 0].reshape(6, 9).astype(f32)    # (c2, qi*3+qj)
    pw3 = p["w_pw3"][:, :, 0, 0].astype(f32)            # (c3, c2)

    # Static (trace-time) index tables.
    r9, c9 = np.meshgrid(np.arange(9), np.arange(9), indexing="ij")
    r9 = r9.reshape(-1).astype(np.int32)                # (81,)  flat index == p1
    c9 = c9.reshape(-1).astype(np.int32)
    r_of = (r9 % 3) * 3 + (c9 % 3)                      # dw2 tap index for p1
    q_of = (r9 // 3) * 3 + (c9 // 3)                    # conv2 position for p1

    kh, kw = np.meshgrid(np.arange(3), np.arange(3), indexing="ij")
    kh = kh.reshape(-1).astype(np.int32)                # (9,)  k = kh*3+kw
    kw = kw.reshape(-1).astype(np.int32)

    # W1: (784, 81).  Column p1 holds dw1 at the 9 pixels of its image patch;
    # all other rows (incl. the unused 28th image row/col) stay exactly zero.
    pix = (3 * r9[None, :] + kh[:, None]) * 28 + (3 * c9[None, :] + kw[:, None])  # (9,81)
    w1 = jnp.zeros((784, 81), f32)
    w1 = w1.at[pix.reshape(-1).astype(np.int32),
               np.tile(np.arange(81, dtype=np.int32), 9)].set(
                   jnp.repeat(dw1.reshape(-1), 81))

    # W2: (3, 81, 54).  W2[c1, p1, c2*9+q] = pw2[c2,c1]*dw2[c1,r(p1)]*[q(p1)==q]
    d1 = dw2[:, r_of]                                                  # (3, 81)
    qsel = jnp.asarray((q_of[:, None] == np.arange(9)[None, :]).astype(np.float32))
    w2 = jnp.einsum("oc,cp,pq->cpoq", pw2, d1, qsel).reshape(3, 81, 54)

    # W3: (54, 10).  W3[c2*9+q, c3] = pw3[c3,c2]*dw3[c2,q]
    w3 = jnp.einsum("kc,cq->cqk", pw3, dw3).reshape(54, 10)

    return w1, w2, w3, pw1


@functools.partial(jax.jit, static_argnames=("max_batch_tile",))
def mynet_forward(x_nchw, params, *, max_batch_tile=512):
    """x_nchw: (N, 1, 28, 28) float32 -> (N, 10) log-probabilities."""
    n = x_nchw.shape[0]
    assert x_nchw.shape[1:] == (1, 28, 28)
    w1, w2, w3, pw1 = _fold_weights(params)

    # No host-side patch transpose: the kernel reads the raw flattened images.
    x = x_nchw.reshape(n, 28 * 28).astype(jnp.float32)          # (N, 784), free view

    # Batch tile: sublane-aligned, big enough to amortize per-step overhead, but
    # capped at ~half the batch so the "parallel" grid keeps >= 2 steps (v7x has
    # 2 TensorCores; a 1-step grid would idle one of them).
    bt = min(max_batch_tile, _round_up(max(-(-n // 2), 1), 128))
    npad = _round_up(n, bt)
    if npad != n:
        x = jnp.pad(x, ((0, npad - n), (0, 0)))                 # zero rows -> finite output

    out = pl.pallas_call(
        _mynet_fused_kernel,
        out_shape=jax.ShapeDtypeStruct((npad, 10), jnp.float32),
        grid=(npad // bt,),
        in_specs=[
            pl.BlockSpec((bt, 784), lambda i: (i, 0)),          # image tile (double-buffered)
            pl.BlockSpec((784, 81), lambda i: (0, 0)),          # W1 (fetched once)
            pl.BlockSpec((3, 81, 54), lambda i: (0, 0, 0)),     # W2 (fetched once)
            pl.BlockSpec((54, 10), lambda i: (0, 0)),           # W3 (fetched once)
            pl.BlockSpec(memory_space=pltpu.MemorySpace.SMEM),  # pw1 scalars
        ],
        out_specs=pl.BlockSpec((bt, 10), lambda i: (i, 0)),
        compiler_params=pltpu.CompilerParams(
            dimension_semantics=("parallel",),                  # megacore on v7x
            vmem_limit_bytes=32 * 1024 * 1024),                 # fits v5e/v6e/v7x budgets
    )(x, w1, w2, w3, pw1)

    return out[:n]                                              # (N, 10)


def init_params(key):
    """Deterministic synthetic weights with the exact PyTorch Conv2d shapes."""
    ks = jax.random.split(key, 6)
    return {
        "w_dw1": jax.random.normal(ks[0], (1, 1, 3, 3), jnp.float32) * 0.3,
        "w_pw1": jax.random.normal(ks[1], (3, 1, 1, 1), jnp.float32) * 0.3,
        "w_dw2": jax.random.normal(ks[2], (3, 1, 3, 3), jnp.float32) * 0.3,
        "w_pw2": jax.random.normal(ks[3], (6, 3, 1, 1), jnp.float32) * 0.3,
        "w_dw3": jax.random.normal(ks[4], (6, 1, 3, 3), jnp.float32) * 0.3,
        "w_pw3": jax.random.normal(ks[5], (10, 6, 1, 1), jnp.float32) * 0.3,
    }


def reference_forward(x_nchw, p):
    """Pure-JAX reference matching the PyTorch module (for verification)."""
    def conv(x, w, stride, groups):
        return jax.lax.conv_general_dilated(
            x, w, window_strides=(stride, stride), padding="VALID",
            dimension_numbers=("NCHW", "OIHW", "NCHW"),
            feature_group_count=groups)
    y = jax.nn.relu(conv(conv(x_nchw, p["w_dw1"], 3, 1), p["w_pw1"], 1, 1))
    y = jax.nn.relu(conv(conv(y, p["w_dw2"], 3, 3), p["w_pw2"], 1, 1))
    y = jax.nn.relu(conv(conv(y, p["w_dw3"], 3, 6), p["w_pw3"], 1, 1))
    return jax.nn.log_softmax(y.reshape(-1, 10), axis=1)


if __name__ == "__main__":
    key = jax.random.PRNGKey(0)
    kx, kx2, kp = jax.random.split(key, 3)
    params = init_params(kp)

    # MNIST-like input (three stride-3 3x3 convs: 28 -> 9 -> 3 -> 1).
    x = jax.random.normal(kx, (2, 1, 28, 28), jnp.float32)
    out = jax.block_until_ready(mynet_forward(x, params))
    assert out.shape == (2, 10) and out.dtype == jnp.float32
    ref = jax.block_until_ready(reference_forward(x, params))
    assert jnp.allclose(out, ref, atol=1e-4, rtol=1e-4), "Pallas output != reference"

    # Multi-tile path: 3 batch tiles of 128 on a real "parallel" grid axis.
    xb = jax.random.normal(kx2, (300, 1, 28, 28), jnp.float32)
    outb = jax.block_until_ready(mynet_forward(xb, params, max_batch_tile=128))
    refb = jax.block_until_ready(reference_forward(xb, params))
    assert outb.shape == (300, 10)
    assert jnp.allclose(outb, refb, atol=1e-4, rtol=1e-4), "Pallas != reference (batched)"

    print("KERNEL_OK")
</pallas_src>

<mosaic_0001>
module attributes {stable_mosaic.version = 11 : i64} {
  func.func @_mynet_fused_kernel(%arg0: i32, %arg1: memref<128x784xf32, #tpu.memory_space<vmem>>, %arg2: memref<784x81xf32, #tpu.memory_space<vmem>>, %arg3: memref<3x81x54xf32, #tpu.memory_space<vmem>>, %arg4: memref<54x10xf32, #tpu.memory_space<vmem>>, %arg5: memref<3xf32, #tpu.memory_space<smem>>, %arg6: memref<128x10xf32, #tpu.memory_space<vmem>>) attributes {dimension_semantics = [#tpu.dimension_semantics<parallel>], iteration_bounds = array<i64: 1>, scalar_prefetch = 0 : i64, scratch_operands = 0 : i64, tpu.core_type = #tpu.core_type<tc>, window_params = [{transform_indices = @transform_0, window_bounds = array<i64: 128, 784>}, {pipeline_mode = #tpu.pipeline_mode<synchronous>, transform_indices = @transform_1, window_bounds = array<i64: 784, 81>}, {pipeline_mode = #tpu.pipeline_mode<synchronous>, transform_indices = @transform_2, window_bounds = array<i64: 3, 81, 54>}, {pipeline_mode = #tpu.pipeline_mode<synchronous>, transform_indices = @transform_3, window_bounds = array<i64: 54, 10>}, {transform_indices = @transform_4, window_bounds = array<i64: 3>}, {transform_indices = @transform_5, window_bounds = array<i64: 128, 10>}]} {
    %c0 = arith.constant 0 : index
    %c0_0 = arith.constant 0 : index
    %0 = vector.load %arg1[%c0, %c0_0] : memref<128x784xf32, #tpu.memory_space<vmem>>, vector<128x784xf32>
    %c0_1 = arith.constant 0 : index
    %c0_2 = arith.constant 0 : index
    %1 = vector.load %arg2[%c0_1, %c0_2] : memref<784x81xf32, #tpu.memory_space<vmem>>, vector<784x81xf32>
    %cst = arith.constant dense<0.000000e+00> : vector<128x81xf32>
    %2 = tpu.matmul %0, %1, %cst {dimension_numbers = #tpu.dot_dimension_numbers<[1], [0], [0], [1], [0, 0, 1, 1], [], []>} : vector<128x784xf32>, vector<784x81xf32>, vector<128x81xf32> -> vector<128x81xf32>
    %c0_3 = arith.constant 0 : index
    %3 = memref.load %arg5[%c0_3] : memref<3xf32, #tpu.memory_space<smem>>
    %4 = vector.broadcast %3 : f32 to vector<128x81xf32>
    %5 = arith.mulf %2, %4 : vector<128x81xf32>
    %cst_4 = arith.constant 0.000000e+00 : f32
    %6 = vector.broadcast %cst_4 : f32 to vector<128x81xf32>
    %7 = arith.maximumf %5, %6 : vector<128x81xf32>
    %c0_5 = arith.constant 0 : index
    %c0_6 = arith.constant 0 : index
    %c0_7 = arith.constant 0 : index
    %8 = vector.load %arg3[%c0_5, %c0_6, %c0_7] : memref<3x81x54xf32, #tpu.memory_space<vmem>>, vector<1x81x54xf32>
    %9 = vector.shape_cast %8 : vector<1x81x54xf32> to vector<81x54xf32>
    %cst_8 = arith.constant dense<0.000000e+00> : vector<128x54xf32>
    %10 = tpu.matmul %7, %9, %cst_8 {dimension_numbers = #tpu.dot_dimension_numbers<[1], [0], [0], [1], [0, 0, 1, 1], [], []>} : vector<128x81xf32>, vector<81x54xf32>, vector<128x54xf32> -> vector<128x54xf32>
    %c1 = arith.constant 1 : index
    %11 = memref.load %arg5[%c1] : memref<3xf32, #tpu.memory_space<smem>>
    %12 = vector.broadcast %11 : f32 to vector<128x81xf32>
    %13 = arith.mulf %2, %12 : vector<128x81xf32>
    %cst_9 = arith.constant 0.000000e+00 : f32
    %14 = vector.broadcast %cst_9 : f32 to vector<128x81xf32>
    %15 = arith.maximumf %13, %14 : vector<128x81xf32>
    %c1_10 = arith.constant 1 : index
    %c0_11 = arith.constant 0 : index
    %c0_12 = arith.constant 0 : index
    %16 = vector.load %arg3[%c1_10, %c0_11, %c0_12] : memref<3x81x54xf32, #tpu.memory_space<vmem>>, vector<1x81x54xf32>
    %17 = vector.shape_cast %16 : vector<1x81x54xf32> to vector<81x54xf32>
    %cst_13 = arith.constant dense<0.000000e+00> : vector<128x54xf32>
    %18 = tpu.matmul %15, %17, %cst_13 {dimension_numbers = #tpu.dot_dimension_numbers<[1], [0], [0], [1], [0, 0, 1, 1], [], []>} : vector<128x81xf32>, vector<81x54xf32>, vector<128x54xf32> -> vector<128x54xf32>
    %19 = arith.addf %10, %18 : vector<128x54xf32>
    %c2 = arith.constant 2 : index
    %20 = memref.load %arg5[%c2] : memref<3xf32, #tpu.memory_space<smem>>
    %21 = vector.broadcast %20 : f32 to vector<128x81xf32>
    %22 = arith.mulf %2, %21 : vector<128x81xf32>
    %cst_14 = arith.constant 0.000000e+00 : f32
    %23 = vector.broadcast %cst_14 : f32 to vector<128x81xf32>
    %24 = arith.maximumf %22, %23 : vector<128x81xf32>
    %c2_15 = arith.constant 2 : index
    %c0_16 = arith.constant 0 : index
    %c0_17 = arith.constant 0 : index
    %25 = vector.load %arg3[%c2_15, %c0_16, %c0_17] : memref<3x81x54xf32, #tpu.memory_space<vmem>>, vector<1x81x54xf32>
    %26 = vector.shape_cast %25 : vector<1x81x54xf32> to vector<81x54xf32>
    %cst_18 = arith.constant dense<0.000000e+00> : vector<128x54xf32>
    %27 = tpu.matmul %24, %26, %cst_18 {dimension_numbers = #tpu.dot_dimension_numbers<[1], [0], [0], [1], [0, 0, 1, 1], [], []>} : vector<128x81xf32>, vector<81x54xf32>, vector<128x54xf32> -> vector<128x54xf32>
    %28 = arith.addf %19, %27 : vector<128x54xf32>
    %cst_19 = arith.constant 0.000000e+00 : f32
    %29 = vector.broadcast %cst_19 : f32 to vector<128x54xf32>
    %30 = arith.maximumf %28, %29 : vector<128x54xf32>
    %c0_20 = arith.constant 0 : index
    %c0_21 = arith.constant 0 : index
    %31 = vector.load %arg4[%c0_20, %c0_21] : memref<54x10xf32, #tpu.memory_space<vmem>>, vector<54x10xf32>
    %cst_22 = arith.constant dense<0.000000e+00> : vector<128x10xf32>
    %32 = tpu.matmul %30, %31, %cst_22 {dimension_numbers = #tpu.dot_dimension_numbers<[1], [0], [0], [1], [0, 0, 1, 1], [], []>} : vector<128x54xf32>, vector<54x10xf32>, vector<128x10xf32> -> vector<128x10xf32>
    %cst_23 = arith.constant 0.000000e+00 : f32
    %33 = vector.broadcast %cst_23 : f32 to vector<128x10xf32>
    %34 = arith.maximumf %32, %33 : vector<128x10xf32>
    %cst_24 = arith.constant dense<0xFF800000> : vector<128xf32>
    %35 = vector.multi_reduction <maximumf>, %34, %cst_24 [1] : vector<128x10xf32> to vector<128xf32>
    %36 = vector.shape_cast %35 : vector<128xf32> to vector<128x1xf32>
    %37 = vector.broadcast %36 : vector<128x1xf32> to vector<128x10xf32>
    %38 = arith.subf %34, %37 : vector<128x10xf32>
    %39 = math.exp %38 : vector<128x10xf32>
    %cst_25 = arith.constant dense<0.000000e+00> : vector<128xf32>
    %40 = vector.multi_reduction <add>, %39, %cst_25 [1] : vector<128x10xf32> to vector<128xf32>
    %41 = vector.shape_cast %40 : vector<128xf32> to vector<128x1xf32>
    %42 = math.log %41 : vector<128x1xf32>
    %43 = vector.broadcast %42 : vector<128x1xf32> to vector<128x10xf32>
    %44 = arith.subf %38, %43 : vector<128x10xf32>
    %c0_26 = arith.constant 0 : index
    %c0_27 = arith.constant 0 : index
    %45 = vector.load %arg6[%c0_26, %c0_27] : memref<128x10xf32, #tpu.memory_space<vmem>>, vector<128x10xf32>
    tpu.vector_store %arg6[%c0_26, %c0_27], %44 {strides = array<i32>} : memref<128x10xf32, #tpu.memory_space<vmem>>, vector<128x10xf32>,
    return
  }
  func.func @transform_0(%arg0: i32) -> (i32, i32) {
    %c0_i32 = arith.constant 0 : i32
    %c0_i32_0 = arith.constant 0 : i32
    return %arg0, %c0_i32 : i32, i32
  }
  func.func @transform_1(%arg0: i32) -> (i32, i32) {
    %c0_i32 = arith.constant 0 : i32
    %c0_i32_0 = arith.constant 0 : i32
    %c0_i32_1 = arith.constant 0 : i32
    return %c0_i32, %c0_i32_0 : i32, i32
  }
  func.func @transform_2(%arg0: i32) -> (i32, i32, i32) {
    %c0_i32 = arith.constant 0 : i32
    %c0_i32_0 = arith.constant 0 : i32
    %c0_i32_1 = arith.constant 0 : i32
    %c0_i32_2 = arith.constant 0 : i32
    return %c0_i32, %c0_i32_0, %c0_i32_1 : i32, i32, i32
  }
  func.func @transform_3(%arg0: i32) -> (i32, i32) {
    %c0_i32 = arith.constant 0 : i32
    %c0_i32_0 = arith.constant 0 : i32
    %c0_i32_1 = arith.constant 0 : i32
    return %c0_i32, %c0_i32_0 : i32, i32
  }
  func.func @transform_4(%arg0: i32) -> i32 {
    %c0_i32 = arith.constant 0 : i32
    %c0_i32_0 = arith.constant 0 : i32
    return %c0_i32 : i32
  }
  func.func @transform_5(%arg0: i32) -> (i32, i32) {
    %c0_i32 = arith.constant 0 : i32
    %c0_i32_0 = arith.constant 0 : i32
    return %arg0, %c0_i32 : i32, i32
  }
}

</mosaic_0001>

<llo_original>
// kernel: squeeze.11
$region0: #{squeeze.11}
  %s0 = inlined_call_operand.vmem [shape: f32[3,3], index: 0, kind: input, shape index: {}]
  %s1 = inlined_call_operand.vmem [shape: f32[9], index: 1, kind: output, shape index: {}]
  $region1: #{squeeze.11} parent=0
    #allocation0 [shape = 'u8[4096]{0}', space=vmem, size = 0x1000, scoped, tag = 'scoped mem for output reshape']
    #allocation1 [shape = 'u8[4096]{0}', space=vmem, size = 0x1000, scoped, tag = 'scoped mem for input reshape']
    %s3 = sshll.u32 1, 4
    %s4 = ssub.s32 %s3, 1
    %v5 = vld [vmem:[%s0] sm:%s4]
    %6 = vst [vmem:[#allocation1] sm:%s4] %v5
    %v7 = vld [vmem:[#allocation1] sm:$0x1]
    %vm8 = vcmask 23552
    %9 = vst.msk [vmem:[#allocation0] sm:$0x1] %vm8, %v7
    %s10 = scalar_lea.vmem [#allocation1], 2
    %v11 = vld [vmem:[%s10] sm:$0x1]
    %12 = vrot.lane.b32.xlu0 %v11, 6
    %v13 = vpop.permute.xlu0 %12
    %vm14 = vcmask 72752
    %15 = vst.msk [vmem:[#allocation0] sm:$0x1] %vm14, %v13
    %s16 = scalar_lea.vmem [#allocation1], 1
    %v17 = vld [vmem:[%s16] sm:$0x1]
    %18 = vrot.lane.b32.xlu0 %v17, 3
    %v19 = vpop.permute.xlu0 %18
    %vm20 = vcmask 48152
    %21 = vst.msk [vmem:[#allocation0] sm:$0x1] %vm20, %v19
    %s23 = sshll.u32 1, 1
    %s24 = ssub.s32 %s23, 1
    %v26 = vld [vmem:[#allocation0] sm:%s24]
    %s27 = sshll.u32 1, 1
    %s28 = ssub.s32 %s27, 1
    %29 = vst [vmem:[%s1] sm:%s28] %v26

// kernel: squeeze.7
$region0: #{squeeze.7}
  %s0 = inlined_call_operand.vmem [shape: f32[3,3,3], index: 0, kind: input, shape index: {}]
  %s1 = inlined_call_operand.vmem [shape: f32[3,9], index: 1, kind: output, shape index: {}]
  $region1: #{squeeze.7} parent=0
    #allocation0 [shape = 'u8[4096]{0}', space=vmem, size = 0x1000, scoped, tag = 'scoped mem for output reshape']
    #allocation1 [shape = 'u8[12288]{0}', space=vmem, size = 0x3000, scoped, tag = 'scoped mem for input reshape']
    %s3 = sshll.u32 1, 4
    %s4 = ssub.s32 %s3, 1
    %s5 = smul.addr 4, 2
    %s6 = scalar_lea.vmem %s0, %s5
    %v7 = vld [vmem:[%s6] sm:%s4]
    %s8 = scalar_lea.vmem [#allocation1], 16
    %9 = vst [vmem:[%s8] sm:%s4] %v7
    %s10 = scalar_lea.vmem %s0, 4
    %v11 = vld [vmem:[%s10] sm:%s4]
    %s12 = scalar_lea.vmem [#allocation1], 8
    %13 = vst [vmem:[%s12] sm:%s4] %v11
    %v14 = vld [vmem:[%s0] sm:%s4]
    %15 = vst [vmem:[#allocation1] sm:%s4] %v14
    %v16 = vld [vmem:[#allocation1] ss:$8 sm:$0x7]
    %vm17 = vcmask 23552
    %18 = vst.msk [vmem:[#allocation0] sm:$0x7] %vm17, %v16
    %s19 = scalar_lea.vmem [#allocation1], 2
    %v20 = vld [vmem:[%s19] ss:$8 sm:$0x7]
    %21 = vrot.lane.b32.xlu0 %v20, 6
    %v22 = vpop.permute.xlu0 %21
    %vm23 = vcmask 72752
    %24 = vst.msk [vmem:[#allocation0] sm:$0x7] %vm23, %v22
    %s25 = scalar_lea.vmem [#allocation1], 1
    %v26 = vld [vmem:[%s25] ss:$8 sm:$0x7]
    %27 = vrot.lane.b32.xlu0 %v26, 3
    %v28 = vpop.permute.xlu0 %27
    %vm29 = vcmask 48152
    %30 = vst.msk [vmem:[#allocation0] sm:$0x7] %vm29, %v28
    %s32 = sshll.u32 1, 4
    %s33 = ssub.s32 %s32, 1
    %v35 = vld [vmem:[#allocation0] sm:%s33]
    %s36 = sshll.u32 1, 4
    %s37 = ssub.s32 %s36, 1
    %38 = vst [vmem:[%s1] sm:%s37] %v35

// kernel: squeeze.9
$region0: #{squeeze.9}
  %s0 = inlined_call_operand.vmem [shape: f32[6,3,3], index: 0, kind: input, shape index: {}]
  %s1 = inlined_call_operand.vmem [shape: f32[6,9], index: 1, kind: output, shape index: {}]
  $region1: #{squeeze.9} parent=0
    #allocation0 [shape = 'u8[12288]{0}', space=vmem, size = 0x3000, scoped, tag = 'scoped mem for input reshape']
    %s3 = sshll.u32 1, 4
    %s4 = ssub.s32 %s3, 1
    %s5 = smul.addr 4, 2
    %s6 = scalar_lea.vmem %s0, %s5
    %v7 = vld [vmem:[%s6] sm:%s4]
    %s8 = scalar_lea.vmem [#allocation0], 16
    %9 = vst [vmem:[%s8] sm:%s4] %v7
    %s10 = scalar_lea.vmem %s0, 4
    %v11 = vld [vmem:[%s10] sm:%s4]
    %s12 = scalar_lea.vmem [#allocation0], 8
    %13 = vst [vmem:[%s12] sm:%s4] %v11
    %v14 = vld [vmem:[%s0] sm:%s4]
    %15 = vst [vmem:[#allocation0] sm:%s4] %v14
    %v16 = vld [vmem:[#allocation0] sm:$0x7]
    %vm17 = vcmask 48128
    %18 = vst.msk [vmem:[%s1] sm:$0x7] %vm17, %v16
    %s19 = scalar_lea.vmem [#allocation0], 8
    %v20 = vld [vmem:[%s19] sm:$0x7]
    %vm21 = vcmask 48128
    %s22 = scalar_lea.vmem %s1, 3
    %23 = vst.msk [vmem:[%s22] sm:$0x7] %vm21, %v20
    %s24 = scalar_lea.vmem [#allocation0], 16
    %v25 = vld [vmem:[%s24] sm:$0x7]
    %vm26 = vcmask 48128
    %s27 = scalar_lea.vmem %s1, 6
    %28 = vst.msk [vmem:[%s27] sm:$0x7] %vm26, %v25

// kernel: mynet_forward.1
$region0: #{mynet_forward.1}
  #allocation0 [shape = 'u32[]', space=smem, size = 0x4, offset = 0x4, fixed_abs, tag = 'smem constant byte address 0x4 - core index']
  #allocation1 [shape = 'u32[144,128]{1,0:T(1,128)}', space=vmem, size = 0x12000, scoped, tag = 'internal scratch']
  %s0 = inlined_call_operand.vmem [shape: f32[128,784], index: 0, kind: input, shape index: {}]
  %s1 = inlined_call_operand.vmem [shape: f32[784,81], index: 1, kind: input, shape index: {}]
  %s2 = inlined_call_operand.vmem [shape: f32[3,81,54], index: 2, kind: input, shape index: {}]
  %s3 = inlined_call_operand.vmem [shape: f32[54,10], index: 3, kind: input, shape index: {}]
  %s4 = inlined_call_operand.vmem [shape: f32[3], index: 4, kind: input, shape index: {}]
  %s5 = inlined_call_operand.vmem [shape: f32[128,10], index: 5, kind: output, shape index: {}]
  %s6 = sld [smem:[#allocation0]]
  $region34: #{mynet_forward.1} parent=0
    _
  %s8 = ssub.s32 1, %s6
  %s9 = scalar_select 0, %s8, %s6
  $region1: #{mynet_forward.1} parent=0
    #allocation2 [shape = 'u8[512]{0}', space=smem, size = 0x200, scoped, tag = 'input window, operand 4, single buffered']
    #allocation3 [shape = 's32[1]{0}', space=sflag, size = 0x4, scoped, tag = 'scoped memory for mynet_forward.1']
    %10 = vsyncpa [#allocation3], 0
    // Predicated region
    $region2: #{mynet_forward.1} parent=1 // pred_check
      _
    $region3: #{mynet_forward.1} parent=1 // pred_check_branch
      %12 = sbr.rel (0) target = $region5
    $region4: #{mynet_forward.1} parent=1 // pred_region
      _
    $region5: #{mynet_forward.1} parent=1 // pred_fallthru
      _
    // Predicated region
    $region6: #{mynet_forward.1} parent=1 // pred_check
      _
    $region7: #{mynet_forward.1} parent=1 // pred_check_branch
      %14 = sbr.rel (0) target = $region9
    $region8: #{mynet_forward.1} parent=1 // pred_region
      _
    $region9: #{mynet_forward.1} parent=1 // pred_fallthru
      _
    // Predicated region
    $region10: #{mynet_forward.1} parent=1 // pred_check
      _
    $region11: #{mynet_forward.1} parent=1 // pred_check_branch
      %16 = sbr.rel (0) target = $region13
    $region12: #{mynet_forward.1} parent=1 // pred_region
      _
    $region13: #{mynet_forward.1} parent=1 // pred_fallthru
      _
    // Predicated region
    $region14: #{mynet_forward.1} parent=1 // pred_check
      _
    $region15: #{mynet_forward.1} parent=1 // pred_check_branch
      %18 = sbr.rel (0) target = $region17
    $region16: #{mynet_forward.1} parent=1 // pred_region
      _
    $region17: #{mynet_forward.1} parent=1 // pred_fallthru
      _
    // Predicated region
    $region18: #{mynet_forward.1} parent=1 // pred_check
      _
    $region19: #{mynet_forward.1} parent=1 // pred_check_branch
      %20 = sbr.rel (0) target = $region21
    $region20: #{mynet_forward.1} parent=1 // pred_region
      %s22 = ssub.s32 16, 16
      %23 = vsyncadd [#allocation3], %s22
      %s25 = sshll.u32 %s4, 4
      %s26 = int_to_ptr.vmem [resolvable:$true] %s25
      %28 = dma.vmem_to_smem %s26, 16, [#allocation2], [#allocation3]
    $region21: #{mynet_forward.1} parent=1 // pred_fallthru
      _
    // Predicated region
    $region22: #{mynet_forward.1} parent=1 // pred_check
      _
    $region23: #{mynet_forward.1} parent=1 // pred_check_branch
      %30 = sbr.rel (0) target = $region25
    $region24: #{mynet_forward.1} parent=1 // pred_region
      %31 = dma.done [#allocation3], 16
    $region25: #{mynet_forward.1} parent=1 // pred_fallthru
      _
    %32 = sfence
    %v33 = vld [vmem:[%s0] sm:$0xff]
    %v34 = vld [vmem:[%s0 + $0x8] sm:$0xff]
    %v35 = vld [vmem:[%s0 + $0x10] sm:$0xff]
    %v36 = vld [vmem:[%s0 + $0x18] sm:$0xff]
    %v37 = vld [vmem:[%s0 + $0x20] sm:$0xff]
    %v38 = vld [vmem:[%s0 + $0x28] sm:$0xff]
    %v39 = vld [vmem:[%s0 + $0x30] sm:$0xff]
    %v40 = vld [vmem:[%s0 + $0x38] sm:$0xff]
    %v41 = vld [vmem:[%s0 + $0x40] sm:$0xff]
    %v42 = vld [vmem:[%s0 + $0x48] sm:$0xff]
    %v43 = vld [vmem:[%s0 + $0x50] sm:$0xff]
    %v44 = vld [vmem:[%s0 + $0x58] sm:$0xff]
    %v45 = vld [vmem:[%s0 + $0x60] sm:$0xff]
    %v46 = vld [vmem:[%s0 + $0x68] sm:$0xff]
    %v47 = vld [vmem:[%s0 + $0x70] sm:$0xff]
    %v48 = vld [vmem:[%s0 + $0x78] sm:$0xff]
    %v49 = vld [vmem:[%s0 + $0x80] sm:$0xff]
    %v50 = vld [vmem:[%s0 + $0x88] sm:$0xff]
    %v51 = vld [vmem:[%s0 + $0x90] sm:$0xff]
    %v52 = vld [vmem:[%s0 + $0x98] sm:$0xff]
    %v53 = vld [vmem:[%s0 + $0xa0] sm:$0xff]
    %v54 = vld [vmem:[%s0 + $0xa8] sm:$0xff]
    %v55 = vld [vmem:[%s0 + $0xb0] sm:$0xff]
    %v56 = vld [vmem:[%s0 + $0xb8] sm:$0xff]
    %v57 = vld [vmem:[%s0 + $0xc0] sm:$0xff]
    %v58 = vld [vmem:[%s0 + $0xc8] sm:$0xff]
    %v59 = vld [vmem:[%s0 + $0xd0] sm:$0xff]
    %v60 = vld [vmem:[%s0 + $0xd8] sm:$0xff]
    %v61 = vld [vmem:[%s0 + $0xe0] sm:$0xff]
    %v62 = vld [vmem:[%s0 + $0xe8] sm:$0xff]
    %v63 = vld [vmem:[%s0 + $0xf0] sm:$0xff]
    %v64 = vld [vmem:[%s0 + $0xf8] sm:$0xff]
    %v65 = vld [vmem:[%s0 + $0x100] sm:$0xff]
    %v66 = vld [vmem:[%s0 + $0x108] sm:$0xff]
    %v67 = vld [vmem:[%s0 + $0x110] sm:$0xff]
    %v68 = vld [vmem:[%s0 + $0x118] sm:$0xff]
    %v69 = vld [vmem:[%s0 + $0x120] sm:$0xff]
    %v70 = vld [vmem:[%s0 + $0x128] sm:$0xff]
    %v71 = vld [vmem:[%s0 + $0x130] sm:$0xff]
    %v72 = vld [vmem:[%s0 + $0x138] sm:$0xff]
    %v73 = vld [vmem:[%s0 + $0x140] sm:$0xff]
    %v74 = vld [vmem:[%s0 + $0x148] sm:$0xff]
    %v75 = vld [vmem:[%s0 + $0x150] sm:$0xff]
    %v76 = vld [vmem:[%s0 + $0x158] sm:$0xff]
    %v77 = vld [vmem:[%s0 + $0x160] sm:$0xff]
    %v78 = vld [vmem:[%s0 + $0x168] sm:$0xff]
    %v79 = vld [vmem:[%s0 + $0x170] sm:$0xff]
    %v80 = vld [vmem:[%s0 + $0x178] sm:$0xff]
    %v81 = vld [vmem:[%s0 + $0x180] sm:$0xff]
    %v82 = vld [vmem:[%s0 + $0x188] sm:$0xff]
    %v83 = vld [vmem:[%s0 + $0x190] sm:$0xff]
    %v84 = vld [vmem:[%s0 + $0x198] sm:$0xff]
    %v85 = vld [vmem:[%s0 + $0x1a0] sm:$0xff]
    %v86 = vld [vmem:[%s0 + $0x1a8] sm:$0xff]
    %v87 = vld [vmem:[%s0 + $0x1b0] sm:$0xff]
    %v88 = vld [vmem:[%s0 + $0x1b8] sm:$0xff]
    %v89 = vld [vmem:[%s0 + $0x1c0] sm:$0xff]
    %v90 = vld [vmem:[%s0 + $0x1c8] sm:$0xff]
    %v91 = vld [vmem:[%s0 + $0x1d0] sm:$0xff]
    %v92 = vld [vmem:[%s0 + $0x1d8] sm:$0xff]
    %v93 = vld [vmem:[%s0 + $0x1e0] sm:$0xff]
    %v94 = vld [vmem:[%s0 + $0x1e8] sm:$0xff]
    %v95 = vld [vmem:[%s0 + $0x1f0] sm:$0xff]
    %v96 = vld [vmem:[%s0 + $0x1f8] sm:$0xff]
    %v97 = vld [vmem:[%s0 + $0x200] sm:$0xff]
    %v98 = vld [vmem:[%s0 + $0x208] sm:$0xff]
    %v99 = vld [vmem:[%s0 + $0x210] sm:$0xff]
    %v100 = vld [vmem:[%s0 + $0x218] sm:$0xff]
    %v101 = vld [vmem:[%s0 + $0x220] sm:$0xff]
    %v102 = vld [vmem:[%s0 + $0x228] sm:$0xff]
    %v103 = vld [vmem:[%s0 + $0x230] sm:$0xff]
    %v104 = vld [vmem:[%s0 + $0x238] sm:$0xff]
    %v105 = vld [vmem:[%s0 + $0x240] sm:$0xff]
    %v106 = vld [vmem:[%s0 + $0x248] sm:$0xff]
    %v107 = vld [vmem:[%s0 + $0x250] sm:$0xff]
    %v108 = vld [vmem:[%s0 + $0x258] sm:$0xff]
    %v109 = vld [vmem:[%s0 + $0x260] sm:$0xff]
    %v110 = vld [vmem:[%s0 + $0x268] sm:$0xff]
    %v111 = vld [vmem:[%s0 + $0x270] sm:$0xff]
    %v112 = vld [vmem:[%s0 + $0x278] sm:$0xff]
    %v113 = vld [vmem:[%s0 + $0x280] sm:$0xff]
    %v114 = vld [vmem:[%s0 + $0x288] sm:$0xff]
    %v115 = vld [vmem:[%s0 + $0x290] sm:$0xff]
    %v116 = vld [vmem:[%s0 + $0x298] sm:$0xff]
    %v117 = vld [vmem:[%s0 + $0x2a0] sm:$0xff]
    %v118 = vld [vmem:[%s0 + $0x2a8] sm:$0xff]
    %v119 = vld [vmem:[%s0 + $0x2b0] sm:$0xff]
    %v120 = vld [vmem:[%s0 + $0x2b8] sm:$0xff]
    %v121 = vld [vmem:[%s0 + $0x2c0] sm:$0xff]
    %v122 = vld [vmem:[%s0 + $0x2c8] sm:$0xff]
    %v123 = vld [vmem:[%s0 + $0x2d0] sm:$0xff]
    %v124 = vld [vmem:[%s0 + $0x2d8] sm:$0xff]
    %v125 = vld [vmem:[%s0 + $0x2e0] sm:$0xff]
    %v126 = vld [vmem:[%s0 + $0x2e8] sm:$0xff]
    %v127 = vld [vmem:[%s0 + $0x2f0] sm:$0xff]
    %v128 = vld [vmem:[%s0 + $0x2f8] sm:$0xff]
    %v129 = vld [vmem:[%s0 + $0x300] sm:$0xff]
    %v130 = vld [vmem:[%s0 + $0x308] sm:$0xff]
    %v131 = vld [vmem:[%s0 + $0x310] sm:$0xff]
    %v132 = vld [vmem:[%s0 + $0x318] sm:$0xff]
    %v133 = vld [vmem:[%s0 + $0x320] sm:$0xff]
    %v134 = vld [vmem:[%s0 + $0x328] sm:$0xff]
    %v135 = vld [vmem:[%s0 + $0x330] sm:$0xff]
    %v136 = vld [vmem:[%s0 + $0x338] sm:$0xff]
    %v137 = vld [vmem:[%s0 + $0x340] sm:$0xff]
    %v138 = vld [vmem:[%s0 + $0x348] sm:$0xff]
    %v139 = vld [vmem:[%s0 + $0x350] sm:$0xff]
    %v140 = vld [vmem:[%s0 + $0x358] sm:$0xff]
    %v141 = vld [vmem:[%s0 + $0x360] sm:$0xff]
    %v142 = vld [vmem:[%s0 + $0x368] sm:$0xff]
    %v143 = vld [vmem:[%s0 + $0x370] sm:$0xff]
    %v144 = vld [vmem:[%s0 + $0x378] sm:$0xff]
    %v145 = vld [vmem:[%s1] sm:$0xff]
    %v146 = vld [vmem:[%s1 + $0x8] sm:$0xff]
    %v147 = vld [vmem:[%s1 + $0x10] sm:$0xff]
    %v148 = vld [vmem:[%s1 + $0x18] sm:$0xff]
    %v149 = vld [vmem:[%s1 + $0x20] sm:$0xff]
    %v150 = vld [vmem:[%s1 + $0x28] sm:$0xff]
    %v151 = vld [vmem:[%s1 + $0x30] sm:$0xff]
    %v152 = vld [vmem:[%s1 + $0x38] sm:$0xff]
    %v153 = vld [vmem:[%s1 + $0x40] sm:$0xff]
    %v154 = vld [vmem:[%s1 + $0x48] sm:$0xff]
    %v155 = vld [vmem:[%s1 + $0x50] sm:$0xff]
    %v156 = vld [vmem:[%s1 + $0x58] sm:$0xff]
    %v157 = vld [vmem:[%s1 + $0x60] sm:$0xff]
    %v158 = vld [vmem:[%s1 + $0x68] sm:$0xff]
    %v159 = vld [vmem:[%s1 + $0x70] sm:$0xff]
    %v160 = vld [vmem:[%s1 + $0x78] sm:$0xff]
    %v161 = vld [vmem:[%s1 + $0x80] sm:$0xff]
    %v162 = vld [vmem:[%s1 + $0x88] sm:$0xff]
    %v163 = vld [vmem:[%s1 + $0x90] sm:$0xff]
    %v164 = vld [vmem:[%s1 + $0x98] sm:$0xff]
    %v165 = vld [vmem:[%s1 + $0xa0] sm:$0xff]
    %v166 = vld [vmem:[%s1 + $0xa8] sm:$0xff]
    %v167 = vld [vmem:[%s1 + $0xb0] sm:$0xff]
    %v168 = vld [vmem:[%s1 + $0xb8] sm:$0xff]
    %v169 = vld [vmem:[%s1 + $0xc0] sm:$0xff]
    %v170 = vld [vmem:[%s1 + $0xc8] sm:$0xff]
    %v171 = vld [vmem:[%s1 + $0xd0] sm:$0xff]
    %v172 = vld [vmem:[%s1 + $0xd8] sm:$0xff]
    %v173 = vld [vmem:[%s1 + $0xe0] sm:$0xff]
    %v174 = vld [vmem:[%s1 + $0xe8] sm:$0xff]
    %v175 = vld [vmem:[%s1 + $0xf0] sm:$0xff]
    %v176 = vld [vmem:[%s1 + $0xf8] sm:$0xff]
    %v177 = vld [vmem:[%s1 + $0x100] sm:$0xff]
    %v178 = vld [vmem:[%s1 + $0x108] sm:$0xff]
    %v179 = vld [vmem:[%s1 + $0x110] sm:$0xff]
    %v180 = vld [vmem:[%s1 + $0x118] sm:$0xff]
    %v181 = vld [vmem:[%s1 + $0x120] sm:$0xff]
    %v182 = vld [vmem:[%s1 + $0x128] sm:$0xff]
    %v183 = vld [vmem:[%s1 + $0x130] sm:$0xff]
    %v184 = vld [vmem:[%s1 + $0x138] sm:$0xff]
    %v185 = vld [vmem:[%s1 + $0x140] sm:$0xff]
    %v186 = vld [vmem:[%s1 + $0x148] sm:$0xff]
    %v187 = vld [vmem:[%s1 + $0x150] sm:$0xff]
    %v188 = vld [vmem:[%s1 + $0x158] sm:$0xff]
    %v189 = vld [vmem:[%s1 + $0x160] sm:$0xff]
    %v190 = vld [vmem:[%s1 + $0x168] sm:$0xff]
    %v191 = vld [vmem:[%s1 + $0x170] sm:$0xff]
    %v192 = vld [vmem:[%s1 + $0x178] sm:$0xff]
    %v193 = vld [vmem:[%s1 + $0x180] sm:$0xff]
    %v194 = vld [vmem:[%s1 + $0x188] sm:$0xff]
    %v195 = vld [vmem:[%s1 + $0x190] sm:$0xff]
    %v196 = vld [vmem:[%s1 + $0x198] sm:$0xff]
    %v197 = vld [vmem:[%s1 + $0x1a0] sm:$0xff]
    %v198 = vld [vmem:[%s1 + $0x1a8] sm:$0xff]
    %v199 = vld [vmem:[%s1 + $0x1b0] sm:$0xff]
    %v200 = vld [vmem:[%s1 + $0x1b8] sm:$0xff]
    %v201 = vld [vmem:[%s1 + $0x1c0] sm:$0xff]
    %v202 = vld [vmem:[%s1 + $0x1c8] sm:$0xff]
    %v203 = vld [vmem:[%s1 + $0x1d0] sm:$0xff]
    %v204 = vld [vmem:[%s1 + $0x1d8] sm:$0xff]
    %v205 = vld [vmem:[%s1 + $0x1e0] sm:$0xff]
    %v206 = vld [vmem:[%s1 + $0x1e8] sm:$0xff]
    %v207 = vld [vmem:[%s1 + $0x1f0] sm:$0xff]
    %v208 = vld [vmem:[%s1 + $0x1f8] sm:$0xff]
    %v209 = vld [vmem:[%s1 + $0x200] sm:$0xff]
    %v210 = vld [vmem:[%s1 + $0x208] sm:$0xff]
    %v211 = vld [vmem:[%s1 + $0x210] sm:$0xff]
    %v212 = vld [vmem:[%s1 + $0x218] sm:$0xff]
    %v213 = vld [vmem:[%s1 + $0x220] sm:$0xff]
    %v214 = vld [vmem:[%s1 + $0x228] sm:$0xff]
    %v215 = vld [vmem:[%s1 + $0x230] sm:$0xff]
    %v216 = vld [vmem:[%s1 + $0x238] sm:$0xff]
    %v217 = vld [vmem:[%s1 + $0x240] sm:$0xff]
    %v218 = vld [vmem:[%s1 + $0x248] sm:$0xff]
    %v219 = vld [vmem:[%s1 + $0x250] sm:$0xff]
    %v220 = vld [vmem:[%s1 + $0x258] sm:$0xff]
    %v221 = vld [vmem:[%s1 + $0x260] sm:$0xff]
    %v222 = vld [vmem:[%s1 + $0x268] sm:$0xff]
    %v223 = vld [vmem:[%s1 + $0x270] sm:$0xff]
    %v224 = vld [vmem:[%s1 + $0x278] sm:$0xff]
    %v225 = vld [vmem:[%s1 + $0x280] sm:$0xff]
    %v226 = vld [vmem:[%s1 + $0x288] sm:$0xff]
    %v227 = vld [vmem:[%s1 + $0x290] sm:$0xff]
    %v228 = vld [vmem:[%s1 + $0x298] sm:$0xff]
    %v229 = vld [vmem:[%s1 + $0x2a0] sm:$0xff]
    %v230 = vld [vmem:[%s1 + $0x2a8] sm:$0xff]
    %v231 = vld [vmem:[%s1 + $0x2b0] sm:$0xff]
    %v232 = vld [vmem:[%s1 + $0x2b8] sm:$0xff]
    %v233 = vld [vmem:[%s1 + $0x2c0] sm:$0xff]
    %v234 = vld [vmem:[%s1 + $0x2c8] sm:$0xff]
    %v235 = vld [vmem:[%s1 + $0x2d0] sm:$0xff]
    %v236 = vld [vmem:[%s1 + $0x2d8] sm:$0xff]
    %v237 = vld [vmem:[%s1 + $0x2e0] sm:$0xff]
    %v238 = vld [vmem:[%s1 + $0x2e8] sm:$0xff]
    %v239 = vld [vmem:[%s1 + $0x2f0] sm:$0xff]
    %v240 = vld [vmem:[%s1 + $0x2f8] sm:$0xff]
    %v241 = vld [vmem:[%s1 + $0x300] sm:$0xff]
    %v242 = vld [vmem:[%s1 + $0x308] sm:$0xff]
    %vm243 = vcmask 130048
    %v245 = vsel %vm243, %v39, 0
    %v248 = vsel %vm243, %v46, 0
    %v251 = vsel %vm243, %v53, 0
    %v254 = vsel %vm243, %v60, 0
    %v257 = vsel %vm243, %v67, 0
    %v260 = vsel %vm243, %v74, 0
    %v263 = vsel %vm243, %v81, 0
    %v266 = vsel %vm243, %v88, 0
    %v269 = vsel %vm243, %v95, 0
    %v272 = vsel %vm243, %v102, 0
    %v275 = vsel %vm243, %v109, 0
    %v278 = vsel %vm243, %v116, 0
    %v281 = vsel %vm243, %v123, 0
    %v284 = vsel %vm243, %v130, 0
    %v287 = vsel %vm243, %v137, 0
    %v290 = vsel %vm243, %v144, 0
    %292 = vmatprep.subr.mxu0 0.0
    %293 = vmatpush1.msra.mxu0 %v160
    %294 = vmatprep.subr.mxu0 0.0
    %295 = vmatpush1.msra.mxu0 %v159
    %296 = vmatprep.subr.mxu0 0.0
    %297 = vmatpush1.msra.mxu0 %v158
    %298 = vmatprep.subr.mxu0 0.0
    %299 = vmatpush1.msra.mxu0 %v157
    %300 = vmatprep.subr.mxu0 0.0
    %301 = vmatpush1.msra.mxu0 %v156
    %302 = vmatprep.subr.mxu0 0.0
    %303 = vmatpush1.msra.mxu0 %v155
    %304 = vmatprep.subr.mxu0 0.0
    %305 = vmatpush1.msra.mxu0 %v154
    %306 = vmatprep.subr.mxu0 0.0
    %307 = vmatpush1.msra.mxu0 %v153
    %308 = vmatprep.subr.mxu0 0.0
    %309 = vmatpush1.msra.mxu0 %v152
    %310 = vmatprep.subr.mxu0 0.0
    %311 = vmatpush1.msra.mxu0 %v151
    %312 = vmatprep.subr.mxu0 0.0
    %313 = vmatpush1.msra.mxu0 %v150
    %314 = vmatprep.subr.mxu0 0.0
    %315 = vmatpush1.msra.mxu0 %v149
    %316 = vmatprep.subr.mxu0 0.0
    %317 = vmatpush1.msra.mxu0 %v148
    %318 = vmatprep.subr.mxu0 0.0
    %319 = vmatpush1.msra.mxu0 %v147
    %320 = vmatprep.subr.mxu0 0.0
    %321 = vmatpush1.msra.mxu0 %v146
    %322 = vmatprep.subr.mxu0 0.0
    %323 = vmatpush1.msra.mxu0 %v145
    %324 = vmatprep.subr.mxu0 0.0
    %325 = vmatpush2.msra.mxu0 %v176
    %326 = vmatprep.subr.mxu0 0.0
    %327 = vmatpush2.msra.mxu0 %v175
    %328 = vmatprep.subr.mxu0 0.0
    %329 = vmatpush2.msra.mxu0 %v174
    %330 = vmatprep.subr.mxu0 0.0
    %331 = vmatpush2.msra.mxu0 %v173
    %332 = vmatprep.subr.mxu0 0.0
    %333 = vmatpush2.msra.mxu0 %v172
    %334 = vmatprep.subr.mxu0 0.0
    %335 = vmatpush2.msra.mxu0 %v171
    %336 = vmatprep.subr.mxu0 0.0
    %337 = vmatpush2.msra.mxu0 %v170
    %338 = vmatprep.subr.mxu0 0.0
    %339 = vmatpush2.msra.mxu0 %v169
    %340 = vmatprep.subr.mxu0 0.0
    %341 = vmatpush2.msra.mxu0 %v168
    %342 = vmatprep.subr.mxu0 0.0
    %343 = vmatpush2.msra.mxu0 %v167
    %344 = vmatprep.subr.mxu0 0.0
    %345 = vmatpush2.msra.mxu0 %v166
    %346 = vmatprep.subr.mxu0 0.0
    %347 = vmatpush2.msra.mxu0 %v165
    %348 = vmatprep.subr.mxu0 0.0
    %349 = vmatpush2.msra.mxu0 %v164
    %350 = vmatprep.subr.mxu0 0.0
    %351 = vmatpush2.msra.mxu0 %v163
    %352 = vmatprep.subr.mxu0 0.0
    %353 = vmatpush2.msra.mxu0 %v162
    %354 = vmatprep.subr.mxu0 0.0
    %355 = vmatpush2.msra.mxu0 %v161
    %356 = vmatprep.mubr.f32.mxu0 %v34
    %357 = vmatmul.mubr.f32.gmra.mxu0 %v33
    %v358 = vpop.f32.mrf.mxu0
    %v359 = vadd.f32 0.0, %v358
    %v360 = vpop.f32.mrf.mxu0
    %361 = vmatprep.mubr.f32.mxu0 %v41
    %362 = vmatmul.mubr.f32.gmra.mxu0 %v40
    %v363 = vpop.f32.mrf.mxu0
    %v364 = vadd.f32 0.0, %v363
    %v365 = vpop.f32.mrf.mxu0
    %366 = vmatprep.mubr.f32.mxu0 %v48
    %367 = vmatmul.mubr.f32.gmra.mxu0 %v47
    %v368 = vpop.f32.mrf.mxu0
    %v369 = vadd.f32 0.0, %v368
    %v370 = vpop.f32.mrf.mxu0
    %371 = vmatprep.mubr.f32.mxu0 %v55
    %372 = vmatmul.mubr.f32.gmra.mxu0 %v54
    %v373 = vpop.f32.mrf.mxu0
    %v374 = vadd.f32 0.0, %v373
    %v375 = vpop.f32.mrf.mxu0
    %376 = vmatprep.mubr.f32.mxu0 %v62
    %377 = vmatmul.mubr.f32.gmra.mxu0 %v61
    %v378 = vpop.f32.mrf.mxu0
    %v379 = vadd.f32 0.0, %v378
    %v380 = vpop.f32.mrf.mxu0
    %381 = vmatprep.mubr.f32.mxu0 %v69
    %382 = vmatmul.mubr.f32.gmra.mxu0 %v68
    %v383 = vpop.f32.mrf.mxu0
    %v384 = vadd.f32 0.0, %v383
    %v385 = vpop.f32.mrf.mxu0
    %386 = vmatprep.mubr.f32.mxu0 %v76
    %387 = vmatmul.mubr.f32.gmra.mxu0 %v75
    %v388 = vpop.f32.mrf.mxu0
    %v389 = vadd.f32 0.0, %v388
    %v390 = vpop.f32.mrf.mxu0
    %391 = vmatprep.mubr.f32.mxu0 %v83
    %392 = vmatmul.mubr.f32.gmra.mxu0 %v82
    %v393 = vpop.f32.mrf.mxu0
    %v394 = vadd.f32 0.0, %v393
    %v395 = vpop.f32.mrf.mxu0
    %396 = vmatprep.mubr.f32.mxu0 %v90
    %397 = vmatmul.mubr.f32.gmra.mxu0 %v89
    %v398 = vpop.f32.mrf.mxu0
    %v399 = vadd.f32 0.0, %v398
    %v400 = vpop.f32.mrf.mxu0
    %401 = vmatprep.mubr.f32.mxu0 %v97
    %402 = vmatmul.mubr.f32.gmra.mxu0 %v96
    %v403 = vpop.f32.mrf.mxu0
    %v404 = vadd.f32 0.0, %v403
    %v405 = vpop.f32.mrf.mxu0
    %406 = vmatprep.mubr.f32.mxu0 %v104
    %407 = vmatmul.mubr.f32.gmra.mxu0 %v103
    %v408 = vpop.f32.mrf.mxu0
    %v409 = vadd.f32 0.0, %v408
    %v410 = vpop.f32.mrf.mxu0
    %411 = vmatprep.mubr.f32.mxu0 %v111
    %412 = vmatmul.mubr.f32.gmra.mxu0 %v110
    %v413 = vpop.f32.mrf.mxu0
    %v414 = vadd.f32 0.0, %v413
    %v415 = vpop.f32.mrf.mxu0
    %416 = vmatprep.mubr.f32.mxu0 %v118
    %417 = vmatmul.mubr.f32.gmra.mxu0 %v117
    %v418 = vpop.f32.mrf.mxu0
    %v419 = vadd.f32 0.0, %v418
    %v420 = vpop.f32.mrf.mxu0
    %421 = vmatprep.mubr.f32.mxu0 %v125
    %422 = vmatmul.mubr.f32.gmra.mxu0 %v124
    %v423 = vpop.f32.mrf.mxu0
    %v424 = vadd.f32 0.0, %v423
    %v425 = vpop.f32.mrf.mxu0
    %426 = vmatprep.mubr.f32.mxu0 %v132
    %427 = vmatmul.mubr.f32.gmra.mxu0 %v131
    %v428 = vpop.f32.mrf.mxu0
    %v429 = vadd.f32 0.0, %v428
    %v430 = vpop.f32.mrf.mxu0
    %431 = vmatprep.mubr.f32.mxu0 %v139
    %432 = vmatmul.mubr.f32.gmra.mxu0 %v138
    %v433 = vpop.f32.mrf.mxu0
    %v434 = vadd.f32 0.0, %v433
    %v435 = vpop.f32.mrf.mxu0
    %436 = vdwg.mxu0
    %437 = vmatprep.subr.mxu0 0.0
    %438 = vmatpush1.msra.mxu0 %v192
    %439 = vmatprep.subr.mxu0 0.0
    %440 = vmatpush1.msra.mxu0 %v191
    %441 = vmatprep.subr.mxu0 0.0
    %442 = vmatpush1.msra.mxu0 %v190
    %443 = vmatprep.subr.mxu0 0.0
    %444 = vmatpush1.msra.mxu0 %v189
    %445 = vmatprep.subr.mxu0 0.0
    %446 = vmatpush1.msra.mxu0 %v188
    %447 = vmatprep.subr.mxu0 0.0
    %448 = vmatpush1.msra.mxu0 %v187
    %449 = vmatprep.subr.mxu0 0.0
    %450 = vmatpush1.msra.mxu0 %v186
    %451 = vmatprep.subr.mxu0 0.0
    %452 = vmatpush1.msra.mxu0 %v185
    %453 = vmatprep.subr.mxu0 0.0
    %454 = vmatpush1.msra.mxu0 %v184
    %455 = vmatprep.subr.mxu0 0.0
    %456 = vmatpush1.msra.mxu0 %v183
    %457 = vmatprep.subr.mxu0 0.0
    %458 = vmatpush1.msra.mxu0 %v182
    %459 = vmatprep.subr.mxu0 0.0
    %460 = vmatpush1.msra.mxu0 %v181
    %461 = vmatprep.subr.mxu0 0.0
    %462 = vmatpush1.msra.mxu0 %v180
    %463 = vmatprep.subr.mxu0 0.0
    %464 = vmatpush1.msra.mxu0 %v179
    %465 = vmatprep.subr.mxu0 0.0
    %466 = vmatpush1.msra.mxu0 %v178
    %467 = vmatprep.subr.mxu0 0.0
    %468 = vmatpush1.msra.mxu0 %v177
    %469 = vmatprep.subr.mxu0 0.0
    %470 = vmatpush2.msra.mxu0 %v208
    %471 = vmatprep.subr.mxu0 0.0
    %472 = vmatpush2.msra.mxu0 %v207
    %473 = vmatprep.subr.mxu0 0.0
    %474 = vmatpush2.msra.mxu0 %v206
    %475 = vmatprep.subr.mxu0 0.0
    %476 = vmatpush2.msra.mxu0 %v205
    %477 = vmatprep.subr.mxu0 0.0
    %478 = vmatpush2.msra.mxu0 %v204
    %479 = vmatprep.subr.mxu0 0.0
    %480 = vmatpush2.msra.mxu0 %v203
    %481 = vmatprep.subr.mxu0 0.0
    %482 = vmatpush2.msra.mxu0 %v202
    %483 = vmatprep.subr.mxu0 0.0
    %484 = vmatpush2.msra.mxu0 %v201
    %485 = vmatprep.subr.mxu0 0.0
    %486 = vmatpush2.msra.mxu0 %v200
    %487 = vmatprep.subr.mxu0 0.0
    %488 = vmatpush2.msra.mxu0 %v199
    %489 = vmatprep.subr.mxu0 0.0
    %490 = vmatpush2.msra.mxu0 %v198
    %491 = vmatprep.subr.mxu0 0.0
    %492 = vmatpush2.msra.mxu0 %v197
    %493 = vmatprep.subr.mxu0 0.0
    %494 = vmatpush2.msra.mxu0 %v196
    %495 = vmatprep.subr.mxu0 0.0
    %496 = vmatpush2.msra.mxu0 %v195
    %497 = vmatprep.subr.mxu0 0.0
    %498 = vmatpush2.msra.mxu0 %v194
    %499 = vmatprep.subr.mxu0 0.0
    %500 = vmatpush2.msra.mxu0 %v193
    %501 = vmatprep.mubr.f32.mxu0 %v36
    %502 = vmatmul.mubr.f32.gmra.mxu0 %v35
    %v503 = vpop.f32.mrf.mxu0
    %v504 = vadd.f32 %v359, %v503
    %v505 = vpop.f32.mrf.mxu0
    %506 = vmatprep.mubr.f32.mxu0 %v43
    %507 = vmatmul.mubr.f32.gmra.mxu0 %v42
    %v508 = vpop.f32.mrf.mxu0
    %v509 = vadd.f32 %v364, %v508
    %v510 = vpop.f32.mrf.mxu0
    %511 = vmatprep.mubr.f32.mxu0 %v50
    %512 = vmatmul.mubr.f32.gmra.mxu0 %v49
    %v513 = vpop.f32.mrf.mxu0
    %v514 = vadd.f32 %v369, %v513
    %v515 = vpop.f32.mrf.mxu0
    %516 = vmatprep.mubr.f32.mxu0 %v57
    %517 = vmatmul.mubr.f32.gmra.mxu0 %v56
    %v518 = vpop.f32.mrf.mxu0
    %v519 = vadd.f32 %v374, %v518
    %v520 = vpop.f32.mrf.mxu0
    %521 = vmatprep.mubr.f32.mxu0 %v64
    %522 = vmatmul.mubr.f32.gmra.mxu0 %v63
    %v523 = vpop.f32.mrf.mxu0
    %v524 = vadd.f32 %v379, %v523
    %v525 = vpop.f32.mrf.mxu0
    %526 = vmatprep.mubr.f32.mxu0 %v71
    %527 = vmatmul.mubr.f32.gmra.mxu0 %v70
    %v528 = vpop.f32.mrf.mxu0
    %v529 = vadd.f32 %v384, %v528
    %v530 = vpop.f32.mrf.mxu0
    %531 = vmatprep.mubr.f32.mxu0 %v78
    %532 = vmatmul.mubr.f32.gmra.mxu0 %v77
    %v533 = vpop.f32.mrf.mxu0
    %v534 = vadd.f32 %v389, %v533
    %v535 = vpop.f32.mrf.mxu0
    %536 = vmatprep.mubr.f32.mxu0 %v85
    %537 = vmatmul.mubr.f32.gmra.mxu0 %v84
    %v538 = vpop.f32.mrf.mxu0
    %v539 = vadd.f32 %v394, %v538
    %v540 = vpop.f32.mrf.mxu0
    %541 = vmatprep.mubr.f32.mxu0 %v92
    %542 = vmatmul.mubr.f32.gmra.mxu0 %v91
    %v543 = vpop.f32.mrf.mxu0
    %v544 = vadd.f32 %v399, %v543
    %v545 = vpop.f32.mrf.mxu0
    %546 = vmatprep.mubr.f32.mxu0 %v99
    %547 = vmatmul.mubr.f32.gmra.mxu0 %v98
    %v548 = vpop.f32.mrf.mxu0
    %v549 = vadd.f32 %v404, %v548
    %v550 = vpop.f32.mrf.mxu0
    %551 = vmatprep.mubr.f32.mxu0 %v106
    %552 = vmatmul.mubr.f32.gmra.mxu0 %v105
    %v553 = vpop.f32.mrf.mxu0
    %v554 = vadd.f32 %v409, %v553
    %v555 = vpop.f32.mrf.mxu0
    %556 = vmatprep.mubr.f32.mxu0 %v113
    %557 = vmatmul.mubr.f32.gmra.mxu0 %v112
    %v558 = vpop.f32.mrf.mxu0
    %v559 = vadd.f32 %v414, %v558
    %v560 = vpop.f32.mrf.mxu0
    %561 = vmatprep.mubr.f32.mxu0 %v120
    %562 = vmatmul.mubr.f32.gmra.mxu0 %v119
    %v563 = vpop.f32.mrf.mxu0
    %v564 = vadd.f32 %v419, %v563
    %v565 = vpop.f32.mrf.mxu0
    %566 = vmatprep.mubr.f32.mxu0 %v127
    %567 = vmatmul.mubr.f32.gmra.mxu0 %v126
    %v568 = vpop.f32.mrf.mxu0
    %v569 = vadd.f32 %v424, %v568
    %v570 = vpop.f32.mrf.mxu0
    %571 = vmatprep.mubr.f32.mxu0 %v134
    %572 = vmatmul.mubr.f32.gmra.mxu0 %v133
    %v573 = vpop.f32.mrf.mxu0
    %v574 = vadd.f32 %v429, %v573
    %v575 = vpop.f32.mrf.mxu0
    %576 = vmatprep.mubr.f32.mxu0 %v141
    %577 = vmatmul.mubr.f32.gmra.mxu0 %v140
    %v578 = vpop.f32.mrf.mxu0
    %v579 = vadd.f32 %v434, %v578
    %v580 = vpop.f32.mrf.mxu0
    %581 = vdwg.mxu0
    %582 = vmatprep.subr.mxu0 0.0
    %583 = vmatpush1.msra.mxu0 %v224
    %584 = vmatprep.subr.mxu0 0.0
    %585 = vmatpush1.msra.mxu0 %v223
    %586 = vmatprep.subr.mxu0 0.0
    %587 = vmatpush1.msra.mxu0 %v222
    %588 = vmatprep.subr.mxu0 0.0
    %589 = vmatpush1.msra.mxu0 %v221
    %590 = vmatprep.subr.mxu0 0.0
    %591 = vmatpush1.msra.mxu0 %v220
    %592 = vmatprep.subr.mxu0 0.0
    %593 = vmatpush1.msra.mxu0 %v219
    %594 = vmatprep.subr.mxu0 0.0
    %595 = vmatpush1.msra.mxu0 %v218
    %596 = vmatprep.subr.mxu0 0.0
    %597 = vmatpush1.msra.mxu0 %v217
    %598 = vmatprep.subr.mxu0 0.0
    %599 = vmatpush1.msra.mxu0 %v216
    %600 = vmatprep.subr.mxu0 0.0
    %601 = vmatpush1.msra.mxu0 %v215
    %602 = vmatprep.subr.mxu0 0.0
    %603 = vmatpush1.msra.mxu0 %v214
    %604 = vmatprep.subr.mxu0 0.0
    %605 = vmatpush1.msra.mxu0 %v213
    %606 = vmatprep.subr.mxu0 0.0
    %607 = vmatpush1.msra.mxu0 %v212
    %608 = vmatprep.subr.mxu0 0.0
    %609 = vmatpush1.msra.mxu0 %v211
    %610 = vmatprep.subr.mxu0 0.0
    %611 = vmatpush1.msra.mxu0 %v210
    %612 = vmatprep.subr.mxu0 0.0
    %613 = vmatpush1.msra.mxu0 %v209
    %614 = vmatprep.subr.mxu0 0.0
    %615 = vmatpush2.msra.mxu0 %v240
    %616 = vmatprep.subr.mxu0 0.0
    %617 = vmatpush2.msra.mxu0 %v239
    %618 = vmatprep.subr.mxu0 0.0
    %619 = vmatpush2.msra.mxu0 %v238
    %620 = vmatprep.subr.mxu0 0.0
    %621 = vmatpush2.msra.mxu0 %v237
    %622 = vmatprep.subr.mxu0 0.0
    %623 = vmatpush2.msra.mxu0 %v236
    %624 = vmatprep.subr.mxu0 0.0
    %625 = vmatpush2.msra.mxu0 %v235
    %626 = vmatprep.subr.mxu0 0.0
    %627 = vmatpush2.msra.mxu0 %v234
    %628 = vmatprep.subr.mxu0 0.0
    %629 = vmatpush2.msra.mxu0 %v233
    %630 = vmatprep.subr.mxu0 0.0
    %631 = vmatpush2.msra.mxu0 %v232
    %632 = vmatprep.subr.mxu0 0.0
    %633 = vmatpush2.msra.mxu0 %v231
    %634 = vmatprep.subr.mxu0 0.0
    %635 = vmatpush2.msra.mxu0 %v230
    %636 = vmatprep.subr.mxu0 0.0
    %637 = vmatpush2.msra.mxu0 %v229
    %638 = vmatprep.subr.mxu0 0.0
    %639 = vmatpush2.msra.mxu0 %v228
    %640 = vmatprep.subr.mxu0 0.0
    %641 = vmatpush2.msra.mxu0 %v227
    %642 = vmatprep.subr.mxu0 0.0
    %643 = vmatpush2.msra.mxu0 %v226
    %644 = vmatprep.subr.mxu0 0.0
    %645 = vmatpush2.msra.mxu0 %v225
    %646 = vmatprep.mubr.f32.mxu0 %v38
    %647 = vmatmul.mubr.f32.gmra.mxu0 %v37
    %v648 = vpop.f32.mrf.mxu0
    %v649 = vadd.f32 %v504, %v648
    %v650 = vpop.f32.mrf.mxu0
    %651 = vmatprep.mubr.f32.mxu0 %v45
    %652 = vmatmul.mubr.f32.gmra.mxu0 %v44
    %v653 = vpop.f32.mrf.mxu0
    %v654 = vadd.f32 %v509, %v653
    %v655 = vpop.f32.mrf.mxu0
    %656 = vmatprep.mubr.f32.mxu0 %v52
    %657 = vmatmul.mubr.f32.gmra.mxu0 %v51
    %v658 = vpop.f32.mrf.mxu0
    %v659 = vadd.f32 %v514, %v658
    %v660 = vpop.f32.mrf.mxu0
    %661 = vmatprep.mubr.f32.mxu0 %v59
    %662 = vmatmul.mubr.f32.gmra.mxu0 %v58
    %v663 = vpop.f32.mrf.mxu0
    %v664 = vadd.f32 %v519, %v663
    %v665 = vpop.f32.mrf.mxu0
    %666 = vmatprep.mubr.f32.mxu0 %v66
    %667 = vmatmul.mubr.f32.gmra.mxu0 %v65
    %v668 = vpop.f32.mrf.mxu0
    %v669 = vadd.f32 %v524, %v668
    %v670 = vpop.f32.mrf.mxu0
    %671 = vmatprep.mubr.f32.mxu0 %v73
    %672 = vmatmul.mubr.f32.gmra.mxu0 %v72
    %v673 = vpop.f32.mrf.mxu0
    %v674 = vadd.f32 %v529, %v673
    %v675 = vpop.f32.mrf.mxu0
    %676 = vmatprep.mubr.f32.mxu0 %v80
    %677 = vmatmul.mubr.f32.gmra.mxu0 %v79
    %v678 = vpop.f32.mrf.mxu0
    %v679 = vadd.f32 %v534, %v678
    %v680 = vpop.f32.mrf.mxu0
    %681 = vmatprep.mubr.f32.mxu0 %v87
    %682 = vmatmul.mubr.f32.gmra.mxu0 %v86
    %v683 = vpop.f32.mrf.mxu0
    %v684 = vadd.f32 %v539, %v683
    %v685 = vpop.f32.mrf.mxu0
    %686 = vmatprep.mubr.f32.mxu0 %v94
    %687 = vmatmul.mubr.f32.gmra.mxu0 %v93
    %v688 = vpop.f32.mrf.mxu0
    %v689 = vadd.f32 %v544, %v688
    %v690 = vpop.f32.mrf.mxu0
    %691 = vmatprep.mubr.f32.mxu0 %v101
    %692 = vmatmul.mubr.f32.gmra.mxu0 %v100
    %v693 = vpop.f32.mrf.mxu0
    %v694 = vadd.f32 %v549, %v693
    %v695 = vpop.f32.mrf.mxu0
    %696 = vmatprep.mubr.f32.mxu0 %v108
    %697 = vmatmul.mubr.f32.gmra.mxu0 %v107
    %v698 = vpop.f32.mrf.mxu0
    %v699 = vadd.f32 %v554, %v698
    %v700 = vpop.f32.mrf.mxu0
    %701 = vmatprep.mubr.f32.mxu0 %v115
    %702 = vmatmul.mubr.f32.gmra.mxu0 %v114
    %v703 = vpop.f32.mrf.mxu0
    %v704 = vadd.f32 %v559, %v703
    %v705 = vpop.f32.mrf.mxu0
    %706 = vmatprep.mubr.f32.mxu0 %v122
    %707 = vmatmul.mubr.f32.gmra.mxu0 %v121
    %v708 = vpop.f32.mrf.mxu0
    %v709 = vadd.f32 %v564, %v708
    %v710 = vpop.f32.mrf.mxu0
    %711 = vmatprep.mubr.f32.mxu0 %v129
    %712 = vmatmul.mubr.f32.gmra.mxu0 %v128
    %v713 = vpop.f32.mrf.mxu0
    %v714 = vadd.f32 %v569, %v713
    %v715 = vpop.f32.mrf.mxu0
    %716 = vmatprep.mubr.f32.mxu0 %v136
    %717 = vmatmul.mubr.f32.gmra.mxu0 %v135
    %v718 = vpop.f32.mrf.mxu0
    %v719 = vadd.f32 %v574, %v718
    %v720 = vpop.f32.mrf.mxu0
    %721 = vmatprep.mubr.f32.mxu0 %v143
    %722 = vmatmul.mubr.f32.gmra.mxu0 %v142
    %v723 = vpop.f32.mrf.mxu0
    %v724 = vadd.f32 %v579, %v723
    %v725 = vpop.f32.mrf.mxu0
    %726 = vdwg.mxu0
    %727 = vmatprep.subr.mxu0 0.0
    %728 = vmatpush1.msra.mxu0 0.0
    %729 = vmatprep.subr.mxu0 0.0
    %730 = vmatpush1.msra.mxu0 0.0
    %731 = vmatprep.subr.mxu0 0.0
    %732 = vmatpush1.msra.mxu0 0.0
    %733 = vmatprep.subr.mxu0 0.0
    %734 = vmatpush1.msra.mxu0 0.0
    %735 = vmatprep.subr.mxu0 0.0
    %736 = vmatpush1.msra.mxu0 0.0
    %737 = vmatprep.subr.mxu0 0.0
    %738 = vmatpush1.msra.mxu0 0.0
    %739 = vmatprep.subr.mxu0 0.0
    %740 = vmatpush1.msra.mxu0 0.0
    %741 = vmatprep.subr.mxu0 0.0
    %742 = vmatpush1.msra.mxu0 0.0
    %743 = vmatprep.subr.mxu0 0.0
    %744 = vmatpush1.msra.mxu0 0.0
    %745 = vmatprep.subr.mxu0 0.0
    %746 = vmatpush1.msra.mxu0 0.0
    %747 = vmatprep.subr.mxu0 0.0
    %748 = vmatpush1.msra.mxu0 0.0
    %749 = vmatprep.subr.mxu0 0.0
    %750 = vmatpush1.msra.mxu0 0.0
    %751 = vmatprep.subr.mxu0 0.0
    %752 = vmatpush1.msra.mxu0 0.0
    %753 = vmatprep.subr.mxu0 0.0
    %754 = vmatpush1.msra.mxu0 0.0
    %755 = vmatprep.subr.mxu0 0.0
    %756 = vmatpush1.msra.mxu0 %v242
    %757 = vmatprep.subr.mxu0 0.0
    %758 = vmatpush1.msra.mxu0 %v241
    %759 = vmatprep.subr.mxu0 0.0
    %760 = vmatpush2.msra.mxu0 0.0
    %761 = vmatprep.subr.mxu0 0.0
    %762 = vmatpush2.msra.mxu0 0.0
    %763 = vmatprep.subr.mxu0 0.0
    %764 = vmatpush2.msra.mxu0 0.0
    %765 = vmatprep.subr.mxu0 0.0
    %766 = vmatpush2.msra.mxu0 0.0
    %767 = vmatprep.subr.mxu0 0.0
    %768 = vmatpush2.msra.mxu0 0.0
    %769 = vmatprep.subr.mxu0 0.0
    %770 = vmatpush2.msra.mxu0 0.0
    %771 = vmatprep.subr.mxu0 0.0
    %772 = vmatpush2.msra.mxu0 0.0
    %773 = vmatprep.subr.mxu0 0.0
    %774 = vmatpush2.msra.mxu0 0.0
    %775 = vmatprep.subr.mxu0 0.0
    %776 = vmatpush2.msra.mxu0 0.0
    %777 = vmatprep.subr.mxu0 0.0
    %778 = vmatpush2.msra.mxu0 0.0
    %779 = vmatprep.subr.mxu0 0.0
    %780 = vmatpush2.msra.mxu0 0.0
    %781 = vmatprep.subr.mxu0 0.0
    %782 = vmatpush2.msra.mxu0 0.0
    %783 = vmatprep.subr.mxu0 0.0
    %784 = vmatpush2.msra.mxu0 0.0
    %785 = vmatprep.subr.mxu0 0.0
    %786 = vmatpush2.msra.mxu0 0.0
    %787 = vmatprep.subr.mxu0 0.0
    %788 = vmatpush2.msra.mxu0 0.0
    %789 = vmatprep.subr.mxu0 0.0
    %790 = vmatpush2.msra.mxu0 0.0
    %791 = vmatprep.mubr.f32.mxu0 0.0
    %792 = vmatmul.mubr.f32.gmra.mxu0 %v245
    %v793 = vpop.f32.mrf.mxu0
    %v794 = vadd.f32 %v649, %v793
    %v795 = vpop.f32.mrf.mxu0
    %796 = vmatprep.mubr.f32.mxu0 0.0
    %797 = vmatmul.mubr.f32.gmra.mxu0 %v248
    %v798 = vpop.f32.mrf.mxu0
    %v799 = vadd.f32 %v654, %v798
    %v800 = vpop.f32.mrf.mxu0
    %801 = vmatprep.mubr.f32.mxu0 0.0
    %802 = vmatmul.mubr.f32.gmra.mxu0 %v251
    %v803 = vpop.f32.mrf.mxu0
    %v804 = vadd.f32 %v659, %v803
    %v805 = vpop.f32.mrf.mxu0
    %806 = vmatprep.mubr.f32.mxu0 0.0
    %807 = vmatmul.mubr.f32.gmra.mxu0 %v254
    %v808 = vpop.f32.mrf.mxu0
    %v809 = vadd.f32 %v664, %v808
    %v810 = vpop.f32.mrf.mxu0
    %811 = vmatprep.mubr.f32.mxu0 0.0
    %812 = vmatmul.mubr.f32.gmra.mxu0 %v257
    %v813 = vpop.f32.mrf.mxu0
    %v814 = vadd.f32 %v669, %v813
    %v815 = vpop.f32.mrf.mxu0
    %816 = vmatprep.mubr.f32.mxu0 0.0
    %817 = vmatmul.mubr.f32.gmra.mxu0 %v260
    %v818 = vpop.f32.mrf.mxu0
    %v819 = vadd.f32 %v674, %v818
    %v820 = vpop.f32.mrf.mxu0
    %821 = vmatprep.mubr.f32.mxu0 0.0
    %822 = vmatmul.mubr.f32.gmra.mxu0 %v263
    %v823 = vpop.f32.mrf.mxu0
    %v824 = vadd.f32 %v679, %v823
    %v825 = vpop.f32.mrf.mxu0
    %826 = vmatprep.mubr.f32.mxu0 0.0
    %827 = vmatmul.mubr.f32.gmra.mxu0 %v266
    %v828 = vpop.f32.mrf.mxu0
    %v829 = vadd.f32 %v684, %v828
    %v830 = vpop.f32.mrf.mxu0
    %831 = vmatprep.mubr.f32.mxu0 0.0
    %832 = vmatmul.mubr.f32.gmra.mxu0 %v269
    %v833 = vpop.f32.mrf.mxu0
    %v834 = vadd.f32 %v689, %v833
    %v835 = vpop.f32.mrf.mxu0
    %836 = vmatprep.mubr.f32.mxu0 0.0
    %837 = vmatmul.mubr.f32.gmra.mxu0 %v272
    %v838 = vpop.f32.mrf.mxu0
    %v839 = vadd.f32 %v694, %v838
    %v840 = vpop.f32.mrf.mxu0
    %841 = vmatprep.mubr.f32.mxu0 0.0
    %842 = vmatmul.mubr.f32.gmra.mxu0 %v275
    %v843 = vpop.f32.mrf.mxu0
    %v844 = vadd.f32 %v699, %v843
    %v845 = vpop.f32.mrf.mxu0
    %846 = vmatprep.mubr.f32.mxu0 0.0
    %847 = vmatmul.mubr.f32.gmra.mxu0 %v278
    %v848 = vpop.f32.mrf.mxu0
    %v849 = vadd.f32 %v704, %v848
    %v850 = vpop.f32.mrf.mxu0
    %851 = vmatprep.mubr.f32.mxu0 0.0
    %852 = vmatmul.mubr.f32.gmra.mxu0 %v281
    %v853 = vpop.f32.mrf.mxu0
    %v854 = vadd.f32 %v709, %v853
    %v855 = vpop.f32.mrf.mxu0
    %856 = vmatprep.mubr.f32.mxu0 0.0
    %857 = vmatmul.mubr.f32.gmra.mxu0 %v284
    %v858 = vpop.f32.mrf.mxu0
    %v859 = vadd.f32 %v714, %v858
    %v860 = vpop.f32.mrf.mxu0
    %861 = vmatprep.mubr.f32.mxu0 0.0
    %862 = vmatmul.mubr.f32.gmra.mxu0 %v287
    %v863 = vpop.f32.mrf.mxu0
    %v864 = vadd.f32 %v719, %v863
    %v865 = vpop.f32.mrf.mxu0
    %866 = vmatprep.mubr.f32.mxu0 0.0
    %867 = vmatmul.mubr.f32.gmra.mxu0 %v290
    %v868 = vpop.f32.mrf.mxu0
    %v869 = vadd.f32 %v724, %v868
    %v870 = vpop.f32.mrf.mxu0
    %871 = vdwg.mxu0
    %s872 = sld [smem:[#allocation2]]
    %v873 = vstv %s872
    %v874 = vmul.f32 %v794, %v873
    %v875 = vmul.f32 %v799, %v873
    %v876 = vmul.f32 %v804, %v873
    %v877 = vmul.f32 %v809, %v873
    %v878 = vmul.f32 %v814, %v873
    %v879 = vmul.f32 %v819, %v873
    %v880 = vmul.f32 %v824, %v873
    %v881 = vmul.f32 %v829, %v873
    %v882 = vmul.f32 %v834, %v873
    %v883 = vmul.f32 %v839, %v873
    %v884 = vmul.f32 %v844, %v873
    %v885 = vmul.f32 %v849, %v873
    %v886 = vmul.f32 %v854, %v873
    %v887 = vmul.f32 %v859, %v873
    %v888 = vmul.f32 %v864, %v873
    %v889 = vmul.f32 %v869, %v873
    %v890 = vmax.f32 %v874, 0.0
    %v891 = vmax.f32 %v875, 0.0
    %v892 = vmax.f32 %v876, 0.0
    %v893 = vmax.f32 %v877, 0.0
    %v894 = vmax.f32 %v878, 0.0
    %v895 = vmax.f32 %v879, 0.0
    %v896 = vmax.f32 %v880, 0.0
    %v897 = vmax.f32 %v881, 0.0
    %v898 = vmax.f32 %v882, 0.0
    %v899 = vmax.f32 %v883, 0.0
    %v900 = vmax.f32 %v884, 0.0
    %v901 = vmax.f32 %v885, 0.0
    %v902 = vmax.f32 %v886, 0.0
    %v903 = vmax.f32 %v887, 0.0
    %v904 = vmax.f32 %v888, 0.0
    %v905 = vmax.f32 %v889, 0.0
    %v906 = vld [vmem:[%s2] sm:$0xff]
    %v907 = vld [vmem:[%s2 + $0x8] sm:$0xff]
    %v908 = vld [vmem:[%s2 + $0x10] sm:$0xff]
    %v909 = vld [vmem:[%s2 + $0x18] sm:$0xff]
    %v910 = vld [vmem:[%s2 + $0x20] sm:$0xff]
    %v911 = vld [vmem:[%s2 + $0x28] sm:$0xff]
    %v912 = vld [vmem:[%s2 + $0x30] sm:$0xff]
    %v913 = vld [vmem:[%s2 + $0x38] sm:$0xff]
    %v914 = vld [vmem:[%s2 + $0x40] sm:$0xff]
    %v915 = vld [vmem:[%s2 + $0x48] sm:$0xff]
    %v916 = vld [vmem:[%s2 + $0x50] sm:$0x1]
    %s917 = sld [smem:[#allocation2 + $0x1]]
    %v918 = vstv %s917
    %v919 = vmul.f32 %v794, %v918
    %v920 = vmul.f32 %v799, %v918
    %v921 = vmul.f32 %v804, %v918
    %v922 = vmul.f32 %v809, %v918
    %v923 = vmul.f32 %v814, %v918
    %v924 = vmul.f32 %v819, %v918
    %v925 = vmul.f32 %v824, %v918
    %v926 = vmul.f32 %v829, %v918
    %v927 = vmul.f32 %v834, %v918
    %v928 = vmul.f32 %v839, %v918
    %v929 = vmul.f32 %v844, %v918
    %v930 = vmul.f32 %v849, %v918
    %v931 = vmul.f32 %v854, %v918
    %v932 = vmul.f32 %v859, %v918
    %v933 = vmul.f32 %v864, %v918
    %v934 = vmul.f32 %v869, %v918
    %v935 = vmax.f32 %v919, 0.0
    %v936 = vmax.f32 %v920, 0.0
    %v937 = vmax.f32 %v921, 0.0
    %v938 = vmax.f32 %v922, 0.0
    %v939 = vmax.f32 %v923, 0.0
    %v940 = vmax.f32 %v924, 0.0
    %v941 = vmax.f32 %v925, 0.0
    %v942 = vmax.f32 %v926, 0.0
    %v943 = vmax.f32 %v927, 0.0
    %v944 = vmax.f32 %v928, 0.0
    %v945 = vmax.f32 %v929, 0.0
    %v946 = vmax.f32 %v930, 0.0
    %v947 = vmax.f32 %v931, 0.0
    %v948 = vmax.f32 %v932, 0.0
    %v949 = vmax.f32 %v933, 0.0
    %v950 = vmax.f32 %v934, 0.0
    %s951 = scalar_lea.vmem %s2, 88
    %v952 = vld [vmem:[%s951] sm:$0xff]
    %v953 = vld [vmem:[%s951 + $0x8] sm:$0xff]
    %v954 = vld [vmem:[%s951 + $0x10] sm:$0xff]
    %v955 = vld [vmem:[%s951 + $0x18] sm:$0xff]
    %v956 = vld [vmem:[%s951 + $0x20] sm:$0xff]
    %v957 = vld [vmem:[%s951 + $0x28] sm:$0xff]
    %v958 = vld [vmem:[%s951 + $0x30] sm:$0xff]
    %v959 = vld [vmem:[%s951 + $0x38] sm:$0xff]
    %v960 = vld [vmem:[%s951 + $0x40] sm:$0xff]
    %v961 = vld [vmem:[%s951 + $0x48] sm:$0xff]
    %v962 = vld [vmem:[%s951 + $0x50] sm:$0x1]
    %vm963 = vcmask 662528
    %v965 = vsel %vm963, %v935, 0
    %v968 = vsel %vm963, %v936, 0
    %v971 = vsel %vm963, %v937, 0
    %v974 = vsel %vm963, %v938, 0
    %v977 = vsel %vm963, %v939, 0
    %v980 = vsel %vm963, %v940, 0
    %v983 = vsel %vm963, %v941, 0
    %v986 = vsel %vm963, %v942, 0
    %v989 = vsel %vm963, %v943, 0
    %v992 = vsel %vm963, %v944, 0
    %v995 = vsel %vm963, %v945, 0
    %v998 = vsel %vm963, %v946, 0
    %v1001 = vsel %vm963, %v947, 0
    %v1004 = vsel %vm963, %v948, 0
    %v1007 = vsel %vm963, %v949, 0
    %v1010 = vsel %vm963, %v950, 0
    %vm1012 = vcmask 1040384
    %v1014 = vsel %vm1012, %v962, 0
    %1016 = vmatprep.subr.mxu0 0.0
    %1017 = vmatpush1.msra.mxu0 0.0
    %1018 = vmatprep.subr.mxu0 0.0
    %1019 = vmatpush1.msra.mxu0 0.0
    %1020 = vmatprep.subr.mxu0 0.0
    %1021 = vmatpush1.msra.mxu0 0.0
    %1022 = vmatprep.subr.mxu0 0.0
    %1023 = vmatpush1.msra.mxu0 0.0
    %1024 = vmatprep.subr.mxu0 0.0
    %1025 = vmatpush1.msra.mxu0 0.0
    %1026 = vmatprep.subr.mxu0 0.0
    %1027 = vmatpush1.msra.mxu0 %v1014
    %1028 = vmatprep.subr.mxu0 0.0
    %1029 = vmatpush1.msra.mxu0 %v961
    %1030 = vmatprep.subr.mxu0 0.0
    %1031 = vmatpush1.msra.mxu0 %v960
    %1032 = vmatprep.subr.mxu0 0.0
    %1033 = vmatpush1.msra.mxu0 %v959
    %1034 = vmatprep.subr.mxu0 0.0
    %1035 = vmatpush1.msra.mxu0 %v958
    %1036 = vmatprep.subr.mxu0 0.0
    %1037 = vmatpush1.msra.mxu0 %v957
    %1038 = vmatprep.subr.mxu0 0.0
    %1039 = vmatpush1.msra.mxu0 %v956
    %1040 = vmatprep.subr.mxu0 0.0
    %1041 = vmatpush1.msra.mxu0 %v955
    %1042 = vmatprep.subr.mxu0 0.0
    %1043 = vmatpush1.msra.mxu0 %v954
    %1044 = vmatprep.subr.mxu0 0.0
    %1045 = vmatpush1.msra.mxu0 %v953
    %1046 = vmatprep.subr.mxu0 0.0
    %1047 = vmatpush1.msra.mxu0 %v952
    %1048 = vmatprep.subr.mxu0 0.0
    %1049 = vmatpush2.msra.mxu0 0.0
    %1050 = vmatprep.subr.mxu0 0.0
    %1051 = vmatpush2.msra.mxu0 0.0
    %1052 = vmatprep.subr.mxu0 0.0
    %1053 = vmatpush2.msra.mxu0 0.0
    %1054 = vmatprep.subr.mxu0 0.0
    %1055 = vmatpush2.msra.mxu0 0.0
    %1056 = vmatprep.subr.mxu0 0.0
    %1057 = vmatpush2.msra.mxu0 0.0
    %1058 = vmatprep.subr.mxu0 0.0
    %1059 = vmatpush2.msra.mxu0 0.0
    %1060 = vmatprep.subr.mxu0 0.0
    %1061 = vmatpush2.msra.mxu0 0.0
    %1062 = vmatprep.subr.mxu0 0.0
    %1063 = vmatpush2.msra.mxu0 0.0
    %1064 = vmatprep.subr.mxu0 0.0
    %1065 = vmatpush2.msra.mxu0 0.0
    %1066 = vmatprep.subr.mxu0 0.0
    %1067 = vmatpush2.msra.mxu0 0.0
    %1068 = vmatprep.subr.mxu0 0.0
    %1069 = vmatpush2.msra.mxu0 0.0
    %1070 = vmatprep.subr.mxu0 0.0
    %1071 = vmatpush2.msra.mxu0 0.0
    %1072 = vmatprep.subr.mxu0 0.0
    %1073 = vmatpush2.msra.mxu0 0.0
    %1074 = vmatprep.subr.mxu0 0.0
    %1075 = vmatpush2.msra.mxu0 0.0
    %1076 = vmatprep.subr.mxu0 0.0
    %1077 = vmatpush2.msra.mxu0 0.0
    %1078 = vmatprep.subr.mxu0 0.0
    %1079 = vmatpush2.msra.mxu0 0.0
    %1080 = vmatprep.mubr.f32.mxu0 0.0
    %1081 = vmatmul.mubr.f32.gmra.mxu0 %v965
    %v1082 = vpop.f32.mrf.mxu0
    %v1083 = vadd.f32 0.0, %v1082
    %v1084 = vpop.f32.mrf.mxu0
    %1085 = vmatprep.mubr.f32.mxu0 0.0
    %1086 = vmatmul.mubr.f32.gmra.mxu0 %v968
    %v1087 = vpop.f32.mrf.mxu0
    %v1088 = vadd.f32 0.0, %v1087
    %v1089 = vpop.f32.mrf.mxu0
    %1090 = vmatprep.mubr.f32.mxu0 0.0
    %1091 = vmatmul.mubr.f32.gmra.mxu0 %v971
    %v1092 = vpop.f32.mrf.mxu0
    %v1093 = vadd.f32 0.0, %v1092
    %v1094 = vpop.f32.mrf.mxu0
    %1095 = vmatprep.mubr.f32.mxu0 0.0
    %1096 = vmatmul.mubr.f32.gmra.mxu0 %v974
    %v1097 = vpop.f32.mrf.mxu0
    %v1098 = vadd.f32 0.0, %v1097
    %v1099 = vpop.f32.mrf.mxu0
    %1100 = vmatprep.mubr.f32.mxu0 0.0
    %1101 = vmatmul.mubr.f32.gmra.mxu0 %v977
    %v1102 = vpop.f32.mrf.mxu0
    %v1103 = vadd.f32 0.0, %v1102
    %v1104 = vpop.f32.mrf.mxu0
    %1105 = vmatprep.mubr.f32.mxu0 0.0
    %1106 = vmatmul.mubr.f32.gmra.mxu0 %v980
    %v1107 = vpop.f32.mrf.mxu0
    %v1108 = vadd.f32 0.0, %v1107
    %v1109 = vpop.f32.mrf.mxu0
    %1110 = vmatprep.mubr.f32.mxu0 0.0
    %1111 = vmatmul.mubr.f32.gmra.mxu0 %v983
    %v1112 = vpop.f32.mrf.mxu0
    %v1113 = vadd.f32 0.0, %v1112
    %v1114 = vpop.f32.mrf.mxu0
    %1115 = vmatprep.mubr.f32.mxu0 0.0
    %1116 = vmatmul.mubr.f32.gmra.mxu0 %v986
    %v1117 = vpop.f32.mrf.mxu0
    %v1118 = vadd.f32 0.0, %v1117
    %v1119 = vpop.f32.mrf.mxu0
    %1120 = vmatprep.mubr.f32.mxu0 0.0
    %1121 = vmatmul.mubr.f32.gmra.mxu0 %v989
    %v1122 = vpop.f32.mrf.mxu0
    %v1123 = vadd.f32 0.0, %v1122
    %v1124 = vpop.f32.mrf.mxu0
    %1125 = vmatprep.mubr.f32.mxu0 0.0
    %1126 = vmatmul.mubr.f32.gmra.mxu0 %v992
    %v1127 = vpop.f32.mrf.mxu0
    %v1128 = vadd.f32 0.0, %v1127
    %v1129 = vpop.f32.mrf.mxu0
    %1130 = vmatprep.mubr.f32.mxu0 0.0
    %1131 = vmatmul.mubr.f32.gmra.mxu0 %v995
    %v1132 = vpop.f32.mrf.mxu0
    %v1133 = vadd.f32 0.0, %v1132
    %v1134 = vpop.f32.mrf.mxu0
    %1135 = vmatprep.mubr.f32.mxu0 0.0
    %1136 = vmatmul.mubr.f32.gmra.mxu0 %v998
    %v1137 = vpop.f32.mrf.mxu0
    %v1138 = vadd.f32 0.0, %v1137
    %v1139 = vpop.f32.mrf.mxu0
    %1140 = vmatprep.mubr.f32.mxu0 0.0
    %1141 = vmatmul.mubr.f32.gmra.mxu0 %v1001
    %v1142 = vpop.f32.mrf.mxu0
    %v1143 = vadd.f32 0.0, %v1142
    %v1144 = vpop.f32.mrf.mxu0
    %1145 = vmatprep.mubr.f32.mxu0 0.0
    %1146 = vmatmul.mubr.f32.gmra.mxu0 %v1004
    %v1147 = vpop.f32.mrf.mxu0
    %v1148 = vadd.f32 0.0, %v1147
    %v1149 = vpop.f32.mrf.mxu0
    %1150 = vmatprep.mubr.f32.mxu0 0.0
    %1151 = vmatmul.mubr.f32.gmra.mxu0 %v1007
    %v1152 = vpop.f32.mrf.mxu0
    %v1153 = vadd.f32 0.0, %v1152
    %v1154 = vpop.f32.mrf.mxu0
    %1155 = vmatprep.mubr.f32.mxu0 0.0
    %1156 = vmatmul.mubr.f32.gmra.mxu0 %v1010
    %v1157 = vpop.f32.mrf.mxu0
    %v1158 = vadd.f32 0.0, %v1157
    %v1159 = vpop.f32.mrf.mxu0
    %1160 = vdwg.mxu0
    %v1162 = vsel %vm963, %v890, 0
    %v1165 = vsel %vm963, %v891, 0
    %v1168 = vsel %vm963, %v892, 0
    %v1171 = vsel %vm963, %v893, 0
    %v1174 = vsel %vm963, %v894, 0
    %v1177 = vsel %vm963, %v895, 0
    %v1180 = vsel %vm963, %v896, 0
    %v1183 = vsel %vm963, %v897, 0
    %v1186 = vsel %vm963, %v898, 0
    %v1189 = vsel %vm963, %v899, 0
    %v1192 = vsel %vm963, %v900, 0
    %v1195 = vsel %vm963, %v901, 0
    %v1198 = vsel %vm963, %v902, 0
    %v1201 = vsel %vm963, %v903, 0
    %v1204 = vsel %vm963, %v904, 0
    %v1207 = vsel %vm963, %v905, 0
    %v1210 = vsel %vm1012, %v916, 0
    %1212 = vmatprep.subr.mxu0 0.0
    %1213 = vmatpush1.msra.mxu0 0.0
    %1214 = vmatprep.subr.mxu0 0.0
    %1215 = vmatpush1.msra.mxu0 0.0
    %1216 = vmatprep.subr.mxu0 0.0
    %1217 = vmatpush1.msra.mxu0 0.0
    %1218 = vmatprep.subr.mxu0 0.0
    %1219 = vmatpush1.msra.mxu0 0.0
    %1220 = vmatprep.subr.mxu0 0.0
    %1221 = vmatpush1.msra.mxu0 0.0
    %1222 = vmatprep.subr.mxu0 0.0
    %1223 = vmatpush1.msra.mxu0 %v1210
    %1224 = vmatprep.subr.mxu0 0.0
    %1225 = vmatpush1.msra.mxu0 %v915
    %1226 = vmatprep.subr.mxu0 0.0
    %1227 = vmatpush1.msra.mxu0 %v914
    %1228 = vmatprep.subr.mxu0 0.0
    %1229 = vmatpush1.msra.mxu0 %v913
    %1230 = vmatprep.subr.mxu0 0.0
    %1231 = vmatpush1.msra.mxu0 %v912
    %1232 = vmatprep.subr.mxu0 0.0
    %1233 = vmatpush1.msra.mxu0 %v911
    %1234 = vmatprep.subr.mxu0 0.0
    %1235 = vmatpush1.msra.mxu0 %v910
    %1236 = vmatprep.subr.mxu0 0.0
    %1237 = vmatpush1.msra.mxu0 %v909
    %1238 = vmatprep.subr.mxu0 0.0
    %1239 = vmatpush1.msra.mxu0 %v908
    %1240 = vmatprep.subr.mxu0 0.0
    %1241 = vmatpush1.msra.mxu0 %v907
    %1242 = vmatprep.subr.mxu0 0.0
    %1243 = vmatpush1.msra.mxu0 %v906
    %1244 = vmatprep.subr.mxu0 0.0
    %1245 = vmatpush2.msra.mxu0 0.0
    %1246 = vmatprep.subr.mxu0 0.0
    %1247 = vmatpush2.msra.mxu0 0.0
    %1248 = vmatprep.subr.mxu0 0.0
    %1249 = vmatpush2.msra.mxu0 0.0
    %1250 = vmatprep.subr.mxu0 0.0
    %1251 = vmatpush2.msra.mxu0 0.0
    %1252 = vmatprep.subr.mxu0 0.0
    %1253 = vmatpush2.msra.mxu0 0.0
    %1254 = vmatprep.subr.mxu0 0.0
    %1255 = vmatpush2.msra.mxu0 0.0
    %1256 = vmatprep.subr.mxu0 0.0
    %1257 = vmatpush2.msra.mxu0 0.0
    %1258 = vmatprep.subr.mxu0 0.0
    %1259 = vmatpush2.msra.mxu0 0.0
    %1260 = vmatprep.subr.mxu0 0.0
    %1261 = vmatpush2.msra.mxu0 0.0
    %1262 = vmatprep.subr.mxu0 0.0
    %1263 = vmatpush2.msra.mxu0 0.0
    %1264 = vmatprep.subr.mxu0 0.0
    %1265 = vmatpush2.msra.mxu0 0.0
    %1266 = vmatprep.subr.mxu0 0.0
    %1267 = vmatpush2.msra.mxu0 0.0
    %1268 = vmatprep.subr.mxu0 0.0
    %1269 = vmatpush2.msra.mxu0 0.0
    %1270 = vmatprep.subr.mxu0 0.0
    %1271 = vmatpush2.msra.mxu0 0.0
    %1272 = vmatprep.subr.mxu0 0.0
    %1273 = vmatpush2.msra.mxu0 0.0
    %1274 = vmatprep.subr.mxu0 0.0
    %1275 = vmatpush2.msra.mxu0 0.0
    %1276 = vmatprep.mubr.f32.mxu0 0.0
    %1277 = vmatmul.mubr.f32.gmra.mxu0 %v1162
    %v1278 = vpop.f32.mrf.mxu0
    %v1279 = vadd.f32 %v1083, %v1278
    %v1280 = vpop.f32.mrf.mxu0
    %1281 = vmatprep.mubr.f32.mxu0 0.0
    %1282 = vmatmul.mubr.f32.gmra.mxu0 %v1165
    %v1283 = vpop.f32.mrf.mxu0
    %v1284 = vadd.f32 %v1088, %v1283
    %v1285 = vpop.f32.mrf.mxu0
    %1286 = vmatprep.mubr.f32.mxu0 0.0
    %1287 = vmatmul.mubr.f32.gmra.mxu0 %v1168
    %v1288 = vpop.f32.mrf.mxu0
    %v1289 = vadd.f32 %v1093, %v1288
    %v1290 = vpop.f32.mrf.mxu0
    %1291 = vmatprep.mubr.f32.mxu0 0.0
    %1292 = vmatmul.mubr.f32.gmra.mxu0 %v1171
    %v1293 = vpop.f32.mrf.mxu0
    %v1294 = vadd.f32 %v1098, %v1293
    %v1295 = vpop.f32.mrf.mxu0
    %1296 = vmatprep.mubr.f32.mxu0 0.0
    %1297 = vmatmul.mubr.f32.gmra.mxu0 %v1174
    %v1298 = vpop.f32.mrf.mxu0
    %v1299 = vadd.f32 %v1103, %v1298
    %v1300 = vpop.f32.mrf.mxu0
    %1301 = vmatprep.mubr.f32.mxu0 0.0
    %1302 = vmatmul.mubr.f32.gmra.mxu0 %v1177
    %v1303 = vpop.f32.mrf.mxu0
    %v1304 = vadd.f32 %v1108, %v1303
    %v1305 = vpop.f32.mrf.mxu0
    %1306 = vmatprep.mubr.f32.mxu0 0.0
    %1307 = vmatmul.mubr.f32.gmra.mxu0 %v1180
    %v1308 = vpop.f32.mrf.mxu0
    %v1309 = vadd.f32 %v1113, %v1308
    %v1310 = vpop.f32.mrf.mxu0
    %1311 = vmatprep.mubr.f32.mxu0 0.0
    %1312 = vmatmul.mubr.f32.gmra.mxu0 %v1183
    %v1313 = vpop.f32.mrf.mxu0
    %v1314 = vadd.f32 %v1118, %v1313
    %v1315 = vpop.f32.mrf.mxu0
    %1316 = vmatprep.mubr.f32.mxu0 0.0
    %1317 = vmatmul.mubr.f32.gmra.mxu0 %v1186
    %v1318 = vpop.f32.mrf.mxu0
    %v1319 = vadd.f32 %v1123, %v1318
    %v1320 = vpop.f32.mrf.mxu0
    %1321 = vmatprep.mubr.f32.mxu0 0.0
    %1322 = vmatmul.mubr.f32.gmra.mxu0 %v1189
    %v1323 = vpop.f32.mrf.mxu0
    %v1324 = vadd.f32 %v1128, %v1323
    %v1325 = vpop.f32.mrf.mxu0
    %1326 = vmatprep.mubr.f32.mxu0 0.0
    %1327 = vmatmul.mubr.f32.gmra.mxu0 %v1192
    %v1328 = vpop.f32.mrf.mxu0
    %v1329 = vadd.f32 %v1133, %v1328
    %v1330 = vpop.f32.mrf.mxu0
    %1331 = vmatprep.mubr.f32.mxu0 0.0
    %1332 = vmatmul.mubr.f32.gmra.mxu0 %v1195
    %v1333 = vpop.f32.mrf.mxu0
    %v1334 = vadd.f32 %v1138, %v1333
    %v1335 = vpop.f32.mrf.mxu0
    %1336 = vmatprep.mubr.f32.mxu0 0.0
    %1337 = vmatmul.mubr.f32.gmra.mxu0 %v1198
    %v1338 = vpop.f32.mrf.mxu0
    %v1339 = vadd.f32 %v1143, %v1338
    %v1340 = vpop.f32.mrf.mxu0
    %1341 = vmatprep.mubr.f32.mxu0 0.0
    %1342 = vmatmul.mubr.f32.gmra.mxu0 %v1201
    %v1343 = vpop.f32.mrf.mxu0
    %v1344 = vadd.f32 %v1148, %v1343
    %v1345 = vpop.f32.mrf.mxu0
    %1346 = vmatprep.mubr.f32.mxu0 0.0
    %1347 = vmatmul.mubr.f32.gmra.mxu0 %v1204
    %v1348 = vpop.f32.mrf.mxu0
    %v1349 = vadd.f32 %v1153, %v1348
    %v1350 = vpop.f32.mrf.mxu0
    %1351 = vmatprep.mubr.f32.mxu0 0.0
    %1352 = vmatmul.mubr.f32.gmra.mxu0 %v1207
    %v1353 = vpop.f32.mrf.mxu0
    %v1354 = vadd.f32 %v1158, %v1353
    %v1355 = vpop.f32.mrf.mxu0
    %1356 = vdwg.mxu0
    %s1357 = sld [smem:[#allocation2 + $0x2]]
    %v1358 = vstv %s1357
    %v1359 = vmul.f32 %v794, %v1358
    %v1360 = vmul.f32 %v799, %v1358
    %v1361 = vmul.f32 %v804, %v1358
    %v1362 = vmul.f32 %v809, %v1358
    %v1363 = vmul.f32 %v814, %v1358
    %v1364 = vmul.f32 %v819, %v1358
    %v1365 = vmul.f32 %v824, %v1358
    %v1366 = vmul.f32 %v829, %v1358
    %v1367 = vmul.f32 %v834, %v1358
    %v1368 = vmul.f32 %v839, %v1358
    %v1369 = vmul.f32 %v844, %v1358
    %v1370 = vmul.f32 %v849, %v1358
    %v1371 = vmul.f32 %v854, %v1358
    %v1372 = vmul.f32 %v859, %v1358
    %v1373 = vmul.f32 %v864, %v1358
    %v1374 = vmul.f32 %v869, %v1358
    %v1375 = vmax.f32 %v1359, 0.0
    %v1376 = vmax.f32 %v1360, 0.0
    %v1377 = vmax.f32 %v1361, 0.0
    %v1378 = vmax.f32 %v1362, 0.0
    %v1379 = vmax.f32 %v1363, 0.0
    %v1380 = vmax.f32 %v1364, 0.0
    %v1381 = vmax.f32 %v1365, 0.0
    %v1382 = vmax.f32 %v1366, 0.0
    %v1383 = vmax.f32 %v1367, 0.0
    %v1384 = vmax.f32 %v1368, 0.0
    %v1385 = vmax.f32 %v1369, 0.0
    %v1386 = vmax.f32 %v1370, 0.0
    %v1387 = vmax.f32 %v1371, 0.0
    %v1388 = vmax.f32 %v1372, 0.0
    %v1389 = vmax.f32 %v1373, 0.0
    %v1390 = vmax.f32 %v1374, 0.0
    %s1391 = scalar_lea.vmem %s2, 176
    %v1392 = vld [vmem:[%s1391] sm:$0xff]
    %v1393 = vld [vmem:[%s1391 + $0x8] sm:$0xff]
    %v1394 = vld [vmem:[%s1391 + $0x10] sm:$0xff]
    %v1395 = vld [vmem:[%s1391 + $0x18] sm:$0xff]
    %v1396 = vld [vmem:[%s1391 + $0x20] sm:$0xff]
    %v1397 = vld [vmem:[%s1391 + $0x28] sm:$0xff]
    %v1398 = vld [vmem:[%s1391 + $0x30] sm:$0xff]
    %v1399 = vld [vmem:[%s1391 + $0x38] sm:$0xff]
    %v1400 = vld [vmem:[%s1391 + $0x40] sm:$0xff]
    %v1401 = vld [vmem:[%s1391 + $0x48] sm:$0xff]
    %v1402 = vld [vmem:[%s1391 + $0x50] sm:$0x1]
    %v1404 = vsel %vm963, %v1375, 0
    %v1407 = vsel %vm963, %v1376, 0
    %v1410 = vsel %vm963, %v1377, 0
    %v1413 = vsel %vm963, %v1378, 0
    %v1416 = vsel %vm963, %v1379, 0
    %v1419 = vsel %vm963, %v1380, 0
    %v1422 = vsel %vm963, %v1381, 0
    %v1425 = vsel %vm963, %v1382, 0
    %v1428 = vsel %vm963, %v1383, 0
    %v1431 = vsel %vm963, %v1384, 0
    %v1434 = vsel %vm963, %v1385, 0
    %v1437 = vsel %vm963, %v1386, 0
    %v1440 = vsel %vm963, %v1387, 0
    %v1443 = vsel %vm963, %v1388, 0
    %v1446 = vsel %vm963, %v1389, 0
    %v1449 = vsel %vm963, %v1390, 0
    %v1452 = vsel %vm1012, %v1402, 0
    %1454 = vmatprep.subr.mxu0 0.0
    %1455 = vmatpush1.msra.mxu0 0.0
    %1456 = vmatprep.subr.mxu0 0.0
    %1457 = vmatpush1.msra.mxu0 0.0
    %1458 = vmatprep.subr.mxu0 0.0
    %1459 = vmatpush1.msra.mxu0 0.0
    %1460 = vmatprep.subr.mxu0 0.0
    %1461 = vmatpush1.msra.mxu0 0.0
    %1462 = vmatprep.subr.mxu0 0.0
    %1463 = vmatpush1.msra.mxu0 0.0
    %1464 = vmatprep.subr.mxu0 0.0
    %1465 = vmatpush1.msra.mxu0 %v1452
    %1466 = vmatprep.subr.mxu0 0.0
    %1467 = vmatpush1.msra.mxu0 %v1401
    %1468 = vmatprep.subr.mxu0 0.0
    %1469 = vmatpush1.msra.mxu0 %v1400
    %1470 = vmatprep.subr.mxu0 0.0
    %1471 = vmatpush1.msra.mxu0 %v1399
    %1472 = vmatprep.subr.mxu0 0.0
    %1473 = vmatpush1.msra.mxu0 %v1398
    %1474 = vmatprep.subr.mxu0 0.0
    %1475 = vmatpush1.msra.mxu0 %v1397
    %1476 = vmatprep.subr.mxu0 0.0
    %1477 = vmatpush1.msra.mxu0 %v1396
    %1478 = vmatprep.subr.mxu0 0.0
    %1479 = vmatpush1.msra.mxu0 %v1395
    %1480 = vmatprep.subr.mxu0 0.0
    %1481 = vmatpush1.msra.mxu0 %v1394
    %1482 = vmatprep.subr.mxu0 0.0
    %1483 = vmatpush1.msra.mxu0 %v1393
    %1484 = vmatprep.subr.mxu0 0.0
    %1485 = vmatpush1.msra.mxu0 %v1392
    %1486 = vmatprep.subr.mxu0 0.0
    %1487 = vmatpush2.msra.mxu0 0.0
    %1488 = vmatprep.subr.mxu0 0.0
    %1489 = vmatpush2.msra.mxu0 0.0
    %1490 = vmatprep.subr.mxu0 0.0
    %1491 = vmatpush2.msra.mxu0 0.0
    %1492 = vmatprep.subr.mxu0 0.0
    %1493 = vmatpush2.msra.mxu0 0.0
    %1494 = vmatprep.subr.mxu0 0.0
    %1495 = vmatpush2.msra.mxu0 0.0
    %1496 = vmatprep.subr.mxu0 0.0
    %1497 = vmatpush2.msra.mxu0 0.0
    %1498 = vmatprep.subr.mxu0 0.0
    %1499 = vmatpush2.msra.mxu0 0.0
    %1500 = vmatprep.subr.mxu0 0.0
    %1501 = vmatpush2.msra.mxu0 0.0
    %1502 = vmatprep.subr.mxu0 0.0
    %1503 = vmatpush2.msra.mxu0 0.0
    %1504 = vmatprep.subr.mxu0 0.0
    %1505 = vmatpush2.msra.mxu0 0.0
    %1506 = vmatprep.subr.mxu0 0.0
    %1507 = vmatpush2.msra.mxu0 0.0
    %1508 = vmatprep.subr.mxu0 0.0
    %1509 = vmatpush2.msra.mxu0 0.0
    %1510 = vmatprep.subr.mxu0 0.0
    %1511 = vmatpush2.msra.mxu0 0.0
    %1512 = vmatprep.subr.mxu0 0.0
    %1513 = vmatpush2.msra.mxu0 0.0
    %1514 = vmatprep.subr.mxu0 0.0
    %1515 = vmatpush2.msra.mxu0 0.0
    %1516 = vmatprep.subr.mxu0 0.0
    %1517 = vmatpush2.msra.mxu0 0.0
    %1518 = vmatprep.mubr.f32.mxu0 0.0
    %1519 = vmatmul.mubr.f32.gmra.mxu0 %v1404
    %v1520 = vpop.f32.mrf.mxu0
    %v1521 = vadd.f32 0.0, %v1520
    %v1522 = vpop.f32.mrf.mxu0
    %1523 = vmatprep.mubr.f32.mxu0 0.0
    %1524 = vmatmul.mubr.f32.gmra.mxu0 %v1407
    %v1525 = vpop.f32.mrf.mxu0
    %v1526 = vadd.f32 0.0, %v1525
    %v1527 = vpop.f32.mrf.mxu0
    %1528 = vmatprep.mubr.f32.mxu0 0.0
    %1529 = vmatmul.mubr.f32.gmra.mxu0 %v1410
    %v1530 = vpop.f32.mrf.mxu0
    %v1531 = vadd.f32 0.0, %v1530
    %v1532 = vpop.f32.mrf.mxu0
    %1533 = vmatprep.mubr.f32.mxu0 0.0
    %1534 = vmatmul.mubr.f32.gmra.mxu0 %v1413
    %v1535 = vpop.f32.mrf.mxu0
    %v1536 = vadd.f32 0.0, %v1535
    %v1537 = vpop.f32.mrf.mxu0
    %1538 = vmatprep.mubr.f32.mxu0 0.0
    %1539 = vmatmul.mubr.f32.gmra.mxu0 %v1416
    %v1540 = vpop.f32.mrf.mxu0
    %v1541 = vadd.f32 0.0, %v1540
    %v1542 = vpop.f32.mrf.mxu0
    %1543 = vmatprep.mubr.f32.mxu0 0.0
    %1544 = vmatmul.mubr.f32.gmra.mxu0 %v1419
    %v1545 = vpop.f32.mrf.mxu0
    %v1546 = vadd.f32 0.0, %v1545
    %v1547 = vpop.f32.mrf.mxu0
    %1548 = vmatprep.mubr.f32.mxu0 0.0
    %1549 = vmatmul.mubr.f32.gmra.mxu0 %v1422
    %v1550 = vpop.f32.mrf.mxu0
    %v1551 = vadd.f32 0.0, %v1550
    %v1552 = vpop.f32.mrf.mxu0
    %1553 = vmatprep.mubr.f32.mxu0 0.0
    %1554 = vmatmul.mubr.f32.gmra.mxu0 %v1425
    %v1555 = vpop.f32.mrf.mxu0
    %v1556 = vadd.f32 0.0, %v1555
    %v1557 = vpop.f32.mrf.mxu0
    %1558 = vmatprep.mubr.f32.mxu0 0.0
    %1559 = vmatmul.mubr.f32.gmra.mxu0 %v1428
    %v1560 = vpop.f32.mrf.mxu0
    %v1561 = vadd.f32 0.0, %v1560
    %v1562 = vpop.f32.mrf.mxu0
    %1563 = vmatprep.mubr.f32.mxu0 0.0
    %1564 = vmatmul.mubr.f32.gmra.mxu0 %v1431
    %v1565 = vpop.f32.mrf.mxu0
    %v1566 = vadd.f32 0.0, %v1565
    %v1567 = vpop.f32.mrf.mxu0
    %1568 = vmatprep.mubr.f32.mxu0 0.0
    %1569 = vmatmul.mubr.f32.gmra.mxu0 %v1434
    %v1570 = vpop.f32.mrf.mxu0
    %v1571 = vadd.f32 0.0, %v1570
    %v1572 = vpop.f32.mrf.mxu0
    %1573 = vmatprep.mubr.f32.mxu0 0.0
    %1574 = vmatmul.mubr.f32.gmra.mxu0 %v1437
    %v1575 = vpop.f32.mrf.mxu0
    %v1576 = vadd.f32 0.0, %v1575
    %v1577 = vpop.f32.mrf.mxu0
    %1578 = vmatprep.mubr.f32.mxu0 0.0
    %1579 = vmatmul.mubr.f32.gmra.mxu0 %v1440
    %v1580 = vpop.f32.mrf.mxu0
    %v1581 = vadd.f32 0.0, %v1580
    %v1582 = vpop.f32.mrf.mxu0
    %1583 = vmatprep.mubr.f32.mxu0 0.0
    %1584 = vmatmul.mubr.f32.gmra.mxu0 %v1443
    %v1585 = vpop.f32.mrf.mxu0
    %v1586 = vadd.f32 0.0, %v1585
    %v1587 = vpop.f32.mrf.mxu0
    %1588 = vmatprep.mubr.f32.mxu0 0.0
    %1589 = vmatmul.mubr.f32.gmra.mxu0 %v1446
    %v1590 = vpop.f32.mrf.mxu0
    %v1591 = vadd.f32 0.0, %v1590
    %v1592 = vpop.f32.mrf.mxu0
    %1593 = vmatprep.mubr.f32.mxu0 0.0
    %1594 = vmatmul.mubr.f32.gmra.mxu0 %v1449
    %v1595 = vpop.f32.mrf.mxu0
    %v1596 = vadd.f32 0.0, %v1595
    %v1597 = vpop.f32.mrf.mxu0
    %1598 = vdwg.mxu0
    %v1599 = vadd.f32 %v1279, %v1521
    %v1600 = vadd.f32 %v1284, %v1526
    %v1601 = vadd.f32 %v1289, %v1531
    %v1602 = vadd.f32 %v1294, %v1536
    %v1603 = vadd.f32 %v1299, %v1541
    %v1604 = vadd.f32 %v1304, %v1546
    %v1605 = vadd.f32 %v1309, %v1551
    %v1606 = vadd.f32 %v1314, %v1556
    %v1607 = vadd.f32 %v1319, %v1561
    %v1608 = vadd.f32 %v1324, %v1566
    %v1609 = vadd.f32 %v1329, %v1571
    %v1610 = vadd.f32 %v1334, %v1576
    %v1611 = vadd.f32 %v1339, %v1581
    %v1612 = vadd.f32 %v1344, %v1586
    %v1613 = vadd.f32 %v1349, %v1591
    %v1614 = vadd.f32 %v1354, %v1596
    %v1615 = vmax.f32 %v1599, 0.0
    %v1616 = vmax.f32 %v1600, 0.0
    %v1617 = vmax.f32 %v1601, 0.0
    %v1618 = vmax.f32 %v1602, 0.0
    %v1619 = vmax.f32 %v1603, 0.0
    %v1620 = vmax.f32 %v1604, 0.0
    %v1621 = vmax.f32 %v1605, 0.0
    %v1622 = vmax.f32 %v1606, 0.0
    %v1623 = vmax.f32 %v1607, 0.0
    %v1624 = vmax.f32 %v1608, 0.0
    %v1625 = vmax.f32 %v1609, 0.0
    %v1626 = vmax.f32 %v1610, 0.0
    %v1627 = vmax.f32 %v1611, 0.0
    %v1628 = vmax.f32 %v1612, 0.0
    %v1629 = vmax.f32 %v1613, 0.0
    %v1630 = vmax.f32 %v1614, 0.0
    %v1631 = vld [vmem:[%s3] sm:$0xff]
    %v1632 = vld [vmem:[%s3 + $0x8] sm:$0xff]
    %v1633 = vld [vmem:[%s3 + $0x10] sm:$0xff]
    %v1634 = vld [vmem:[%s3 + $0x18] sm:$0xff]
    %v1635 = vld [vmem:[%s3 + $0x20] sm:$0xff]
    %v1636 = vld [vmem:[%s3 + $0x28] sm:$0xff]
    %v1637 = vld [vmem:[%s3 + $0x30] sm:$0x3f]
    %vm1638 = vcmask 441344
    %v1640 = vsel %vm1638, %v1615, 0
    %v1643 = vsel %vm1638, %v1616, 0
    %v1646 = vsel %vm1638, %v1617, 0
    %v1649 = vsel %vm1638, %v1618, 0
    %v1652 = vsel %vm1638, %v1619, 0
    %v1655 = vsel %vm1638, %v1620, 0
    %v1658 = vsel %vm1638, %v1621, 0
    %v1661 = vsel %vm1638, %v1622, 0
    %v1664 = vsel %vm1638, %v1623, 0
    %v1667 = vsel %vm1638, %v1624, 0
    %v1670 = vsel %vm1638, %v1625, 0
    %v1673 = vsel %vm1638, %v1626, 0
    %v1676 = vsel %vm1638, %v1627, 0
    %v1679 = vsel %vm1638, %v1628, 0
    %v1682 = vsel %vm1638, %v1629, 0
    %v1685 = vsel %vm1638, %v1630, 0
    %vm1687 = vcmask 1045504
    %v1689 = vsel %vm1687, %v1637, 0
    %1691 = vmatprep.subr.mxu0 0.0
    %1692 = vmatpush1.msra.mxu0 0.0
    %1693 = vmatprep.subr.mxu0 0.0
    %1694 = vmatpush1.msra.mxu0 0.0
    %1695 = vmatprep.subr.mxu0 0.0
    %1696 = vmatpush1.msra.mxu0 0.0
    %1697 = vmatprep.subr.mxu0 0.0
    %1698 = vmatpush1.msra.mxu0 0.0
    %1699 = vmatprep.subr.mxu0 0.0
    %1700 = vmatpush1.msra.mxu0 0.0
    %1701 = vmatprep.subr.mxu0 0.0
    %1702 = vmatpush1.msra.mxu0 0.0
    %1703 = vmatprep.subr.mxu0 0.0
    %1704 = vmatpush1.msra.mxu0 0.0
    %1705 = vmatprep.subr.mxu0 0.0
    %1706 = vmatpush1.msra.mxu0 0.0
    %1707 = vmatprep.subr.mxu0 0.0
    %1708 = vmatpush1.msra.mxu0 0.0
    %1709 = vmatprep.subr.mxu0 0.0
    %1710 = vmatpush1.msra.mxu0 %v1689
    %1711 = vmatprep.subr.mxu0 0.0
    %1712 = vmatpush1.msra.mxu0 %v1636
    %1713 = vmatprep.subr.mxu0 0.0
    %1714 = vmatpush1.msra.mxu0 %v1635
    %1715 = vmatprep.subr.mxu0 0.0
    %1716 = vmatpush1.msra.mxu0 %v1634
    %1717 = vmatprep.subr.mxu0 0.0
    %1718 = vmatpush1.msra.mxu0 %v1633
    %1719 = vmatprep.subr.mxu0 0.0
    %1720 = vmatpush1.msra.mxu0 %v1632
    %1721 = vmatprep.subr.mxu0 0.0
    %1722 = vmatpush1.msra.mxu0 %v1631
    %1723 = vmatprep.subr.mxu0 0.0
    %1724 = vmatpush2.msra.mxu0 0.0
    %1725 = vmatprep.subr.mxu0 0.0
    %1726 = vmatpush2.msra.mxu0 0.0
    %1727 = vmatprep.subr.mxu0 0.0
    %1728 = vmatpush2.msra.mxu0 0.0
    %1729 = vmatprep.subr.mxu0 0.0
    %1730 = vmatpush2.msra.mxu0 0.0
    %1731 = vmatprep.subr.mxu0 0.0
    %1732 = vmatpush2.msra.mxu0 0.0
    %1733 = vmatprep.subr.mxu0 0.0
    %1734 = vmatpush2.msra.mxu0 0.0
    %1735 = vmatprep.subr.mxu0 0.0
    %1736 = vmatpush2.msra.mxu0 0.0
    %1737 = vmatprep.subr.mxu0 0.0
    %1738 = vmatpush2.msra.mxu0 0.0
    %1739 = vmatprep.subr.mxu0 0.0
    %1740 = vmatpush2.msra.mxu0 0.0
    %1741 = vmatprep.subr.mxu0 0.0
    %1742 = vmatpush2.msra.mxu0 0.0
    %1743 = vmatprep.subr.mxu0 0.0
    %1744 = vmatpush2.msra.mxu0 0.0
    %1745 = vmatprep.subr.mxu0 0.0
    %1746 = vmatpush2.msra.mxu0 0.0
    %1747 = vmatprep.subr.mxu0 0.0
    %1748 = vmatpush2.msra.mxu0 0.0
    %1749 = vmatprep.subr.mxu0 0.0
    %1750 = vmatpush2.msra.mxu0 0.0
    %1751 = vmatprep.subr.mxu0 0.0
    %1752 = vmatpush2.msra.mxu0 0.0
    %1753 = vmatprep.subr.mxu0 0.0
    %1754 = vmatpush2.msra.mxu0 0.0
    %1755 = vmatprep.mubr.f32.mxu0 0.0
    %1756 = vmatmul.mubr.f32.gmra.mxu0 %v1640
    %v1757 = vpop.f32.mrf.mxu0
    %v1758 = vadd.f32 0.0, %v1757
    %v1759 = vpop.f32.mrf.mxu0
    %1760 = vmatprep.mubr.f32.mxu0 0.0
    %1761 = vmatmul.mubr.f32.gmra.mxu0 %v1643
    %v1762 = vpop.f32.mrf.mxu0
    %v1763 = vadd.f32 0.0, %v1762
    %v1764 = vpop.f32.mrf.mxu0
    %1765 = vmatprep.mubr.f32.mxu0 0.0
    %1766 = vmatmul.mubr.f32.gmra.mxu0 %v1646
    %v1767 = vpop.f32.mrf.mxu0
    %v1768 = vadd.f32 0.0, %v1767
    %v1769 = vpop.f32.mrf.mxu0
    %1770 = vmatprep.mubr.f32.mxu0 0.0
    %1771 = vmatmul.mubr.f32.gmra.mxu0 %v1649
    %v1772 = vpop.f32.mrf.mxu0
    %v1773 = vadd.f32 0.0, %v1772
    %v1774 = vpop.f32.mrf.mxu0
    %1775 = vmatprep.mubr.f32.mxu0 0.0
    %1776 = vmatmul.mubr.f32.gmra.mxu0 %v1652
    %v1777 = vpop.f32.mrf.mxu0
    %v1778 = vadd.f32 0.0, %v1777
    %v1779 = vpop.f32.mrf.mxu0
    %1780 = vmatprep.mubr.f32.mxu0 0.0
    %1781 = vmatmul.mubr.f32.gmra.mxu0 %v1655
    %v1782 = vpop.f32.mrf.mxu0
    %v1783 = vadd.f32 0.0, %v1782
    %v1784 = vpop.f32.mrf.mxu0
    %1785 = vmatprep.mubr.f32.mxu0 0.0
    %1786 = vmatmul.mubr.f32.gmra.mxu0 %v1658
    %v1787 = vpop.f32.mrf.mxu0
    %v1788 = vadd.f32 0.0, %v1787
    %v1789 = vpop.f32.mrf.mxu0
    %1790 = vmatprep.mubr.f32.mxu0 0.0
    %1791 = vmatmul.mubr.f32.gmra.mxu0 %v1661
    %v1792 = vpop.f32.mrf.mxu0
    %v1793 = vadd.f32 0.0, %v1792
    %v1794 = vpop.f32.mrf.mxu0
    %1795 = vmatprep.mubr.f32.mxu0 0.0
    %1796 = vmatmul.mubr.f32.gmra.mxu0 %v1664
    %v1797 = vpop.f32.mrf.mxu0
    %v1798 = vadd.f32 0.0, %v1797
    %v1799 = vpop.f32.mrf.mxu0
    %1800 = vmatprep.mubr.f32.mxu0 0.0
    %1801 = vmatmul.mubr.f32.gmra.mxu0 %v1667
    %v1802 = vpop.f32.mrf.mxu0
    %v1803 = vadd.f32 0.0, %v1802
    %v1804 = vpop.f32.mrf.mxu0
    %1805 = vmatprep.mubr.f32.mxu0 0.0
    %1806 = vmatmul.mubr.f32.gmra.mxu0 %v1670
    %v1807 = vpop.f32.mrf.mxu0
    %v1808 = vadd.f32 0.0, %v1807
    %v1809 = vpop.f32.mrf.mxu0
    %1810 = vmatprep.mubr.f32.mxu0 0.0
    %1811 = vmatmul.mubr.f32.gmra.mxu0 %v1673
    %v1812 = vpop.f32.mrf.mxu0
    %v1813 = vadd.f32 0.0, %v1812
    %v1814 = vpop.f32.mrf.mxu0
    %1815 = vmatprep.mubr.f32.mxu0 0.0
    %1816 = vmatmul.mubr.f32.gmra.mxu0 %v1676
    %v1817 = vpop.f32.mrf.mxu0
    %v1818 = vadd.f32 0.0, %v1817
    %v1819 = vpop.f32.mrf.mxu0
    %1820 = vmatprep.mubr.f32.mxu0 0.0
    %1821 = vmatmul.mubr.f32.gmra.mxu0 %v1679
    %v1822 = vpop.f32.mrf.mxu0
    %v1823 = vadd.f32 0.0, %v1822
    %v1824 = vpop.f32.mrf.mxu0
    %1825 = vmatprep.mubr.f32.mxu0 0.0
    %1826 = vmatmul.mubr.f32.gmra.mxu0 %v1682
    %v1827 = vpop.f32.mrf.mxu0
    %v1828 = vadd.f32 0.0, %v1827
    %v1829 = vpop.f32.mrf.mxu0
    %1830 = vmatprep.mubr.f32.mxu0 0.0
    %1831 = vmatmul.mubr.f32.gmra.mxu0 %v1685
    %v1832 = vpop.f32.mrf.mxu0
    %v1833 = vadd.f32 0.0, %v1832
    %v1834 = vpop.f32.mrf.mxu0
    %1835 = vdwg.mxu0
    %v1836 = vmax.f32 %v1758, 0.0
    %v1837 = vmax.f32 %v1763, 0.0
    %v1838 = vmax.f32 %v1768, 0.0
    %v1839 = vmax.f32 %v1773, 0.0
    %v1840 = vmax.f32 %v1778, 0.0
    %v1841 = vmax.f32 %v1783, 0.0
    %v1842 = vmax.f32 %v1788, 0.0
    %v1843 = vmax.f32 %v1793, 0.0
    %v1844 = vmax.f32 %v1798, 0.0
    %v1845 = vmax.f32 %v1803, 0.0
    %v1846 = vmax.f32 %v1808, 0.0
    %v1847 = vmax.f32 %v1813, 0.0
    %v1848 = vmax.f32 %v1818, 0.0
    %v1849 = vmax.f32 %v1823, 0.0
    %v1850 = vmax.f32 %v1828, 0.0
    %v1851 = vmax.f32 %v1833, 0.0
    %vm1852 = vcmask 80896
    %v1853 = vsel %vm1852, %v1836, -inf
    %1854 = vmax.xlane.f32.xlu0 %v1853
    %v1855 = vpop.xlane.xlu0 %1854
    %v1856 = vsel %vm1852, %v1837, -inf
    %1857 = vmax.xlane.f32.xlu0 %v1856
    %v1858 = vpop.xlane.xlu0 %1857
    %v1859 = vsel %vm1852, %v1838, -inf
    %1860 = vmax.xlane.f32.xlu0 %v1859
    %v1861 = vpop.xlane.xlu0 %1860
    %v1862 = vsel %vm1852, %v1839, -inf
    %1863 = vmax.xlane.f32.xlu0 %v1862
    %v1864 = vpop.xlane.xlu0 %1863
    %v1865 = vsel %vm1852, %v1840, -inf
    %1866 = vmax.xlane.f32.xlu0 %v1865
    %v1867 = vpop.xlane.xlu0 %1866
    %v1868 = vsel %vm1852, %v1841, -inf
    %1869 = vmax.xlane.f32.xlu0 %v1868
    %v1870 = vpop.xlane.xlu0 %1869
    %v1871 = vsel %vm1852, %v1842, -inf
    %1872 = vmax.xlane.f32.xlu0 %v1871
    %v1873 = vpop.xlane.xlu0 %1872
    %v1874 = vsel %vm1852, %v1843, -inf
    %1875 = vmax.xlane.f32.xlu0 %v1874
    %v1876 = vpop.xlane.xlu0 %1875
    %v1877 = vsel %vm1852, %v1844, -inf
    %1878 = vmax.xlane.f32.xlu0 %v1877
    %v1879 = vpop.xlane.xlu0 %1878
    %v1880 = vsel %vm1852, %v1845, -inf
    %1881 = vmax.xlane.f32.xlu0 %v1880
    %v1882 = vpop.xlane.xlu0 %1881
    %v1883 = vsel %vm1852, %v1846, -inf
    %1884 = vmax.xlane.f32.xlu0 %v1883
    %v1885 = vpop.xlane.xlu0 %1884
    %v1886 = vsel %vm1852, %v1847, -inf
    %1887 = vmax.xlane.f32.xlu0 %v1886
    %v1888 = vpop.xlane.xlu0 %1887
    %v1889 = vsel %vm1852, %v1848, -inf
    %1890 = vmax.xlane.f32.xlu0 %v1889
    %v1891 = vpop.xlane.xlu0 %1890
    %v1892 = vsel %vm1852, %v1849, -inf
    %1893 = vmax.xlane.f32.xlu0 %v1892
    %v1894 = vpop.xlane.xlu0 %1893
    %v1895 = vsel %vm1852, %v1850, -inf
    %1896 = vmax.xlane.f32.xlu0 %v1895
    %v1897 = vpop.xlane.xlu0 %1896
    %v1898 = vsel %vm1852, %v1851, -inf
    %1899 = vmax.xlane.f32.xlu0 %v1898
    %v1900 = vpop.xlane.xlu0 %1899
    %v1901 = vsub.f32 %v1836, %v1855
    %v1902 = vsub.f32 %v1837, %v1858
    %v1903 = vsub.f32 %v1838, %v1861
    %v1904 = vsub.f32 %v1839, %v1864
    %v1905 = vsub.f32 %v1840, %v1867
    %v1906 = vsub.f32 %v1841, %v1870
    %v1907 = vsub.f32 %v1842, %v1873
    %v1908 = vsub.f32 %v1843, %v1876
    %v1909 = vsub.f32 %v1844, %v1879
    %v1910 = vsub.f32 %v1845, %v1882
    %v1911 = vsub.f32 %v1846, %v1885
    %v1912 = vsub.f32 %v1847, %v1888
    %v1913 = vsub.f32 %v1848, %v1891
    %v1914 = vsub.f32 %v1849, %v1894
    %v1915 = vsub.f32 %v1850, %v1897
    %v1916 = vsub.f32 %v1851, %v1900
    %v1917 = vmul.f32 %v1901, 1.442695
    %v1918 = vpow.pop %v1917
    %v1919 = vmul.f32 %v1902, 1.442695
    %v1920 = vpow.pop %v1919
    %v1921 = vmul.f32 %v1903, 1.442695
    %v1922 = vpow.pop %v1921
    %v1923 = vmul.f32 %v1904, 1.442695
    %v1924 = vpow.pop %v1923
    %v1925 = vmul.f32 %v1905, 1.442695
    %v1926 = vpow.pop %v1925
    %v1927 = vmul.f32 %v1906, 1.442695
    %v1928 = vpow.pop %v1927
    %v1929 = vmul.f32 %v1907, 1.442695
    %v1930 = vpow.pop %v1929
    %v1931 = vmul.f32 %v1908, 1.442695
    %v1932 = vpow.pop %v1931
    %v1933 = vmul.f32 %v1909, 1.442695
    %v1934 = vpow.pop %v1933
    %v1935 = vmul.f32 %v1910, 1.442695
    %v1936 = vpow.pop %v1935
    %v1937 = vmul.f32 %v1911, 1.442695
    %v1938 = vpow.pop %v1937
    %v1939 = vmul.f32 %v1912, 1.442695
    %v1940 = vpow.pop %v1939
    %v1941 = vmul.f32 %v1913, 1.442695
    %v1942 = vpow.pop %v1941
    %v1943 = vmul.f32 %v1914, 1.442695
    %v1944 = vpow.pop %v1943
    %v1945 = vmul.f32 %v1915, 1.442695
    %v1946 = vpow.pop %v1945
    %v1947 = vmul.f32 %v1916, 1.442695
    %v1948 = vpow.pop %v1947
    %v1949 = vsel %vm1852, %v1918, 0.0
    %1950 = vadd.xlane.f32.xlu0 %v1949
    %v1951 = vpop.xlane.xlu0 %1950
    %v1952 = vsel %vm1852, %v1920, 0.0
    %1953 = vadd.xlane.f32.xlu0 %v1952
    %v1954 = vpop.xlane.xlu0 %1953
    %v1955 = vsel %vm1852, %v1922, 0.0
    %1956 = vadd.xlane.f32.xlu0 %v1955
    %v1957 = vpop.xlane.xlu0 %1956
    %v1958 = vsel %vm1852, %v1924, 0.0
    %1959 = vadd.xlane.f32.xlu0 %v1958
    %v1960 = vpop.xlane.xlu0 %1959
    %v1961 = vsel %vm1852, %v1926, 0.0
    %1962 = vadd.xlane.f32.xlu0 %v1961
    %v1963 = vpop.xlane.xlu0 %1962
    %v1964 = vsel %vm1852, %v1928, 0.0
    %1965 = vadd.xlane.f32.xlu0 %v1964
    %v1966 = vpop.xlane.xlu0 %1965
    %v1967 = vsel %vm1852, %v1930, 0.0
    %1968 = vadd.xlane.f32.xlu0 %v1967
    %v1969 = vpop.xlane.xlu0 %1968
    %v1970 = vsel %vm1852, %v1932, 0.0
    %1971 = vadd.xlane.f32.xlu0 %v1970
    %v1972 = vpop.xlane.xlu0 %1971
    %v1973 = vsel %vm1852, %v1934, 0.0
    %1974 = vadd.xlane.f32.xlu0 %v1973
    %v1975 = vpop.xlane.xlu0 %1974
    %v1976 = vsel %vm1852, %v1936, 0.0
    %1977 = vadd.xlane.f32.xlu0 %v1976
    %v1978 = vpop.xlane.xlu0 %1977
    %v1979 = vsel %vm1852, %v1938, 0.0
    %1980 = vadd.xlane.f32.xlu0 %v1979
    %v1981 = vpop.xlane.xlu0 %1980
    %v1982 = vsel %vm1852, %v1940, 0.0
    %1983 = vadd.xlane.f32.xlu0 %v1982
    %v1984 = vpop.xlane.xlu0 %1983
    %v1985 = vsel %vm1852, %v1942, 0.0
    %1986 = vadd.xlane.f32.xlu0 %v1985
    %v1987 = vpop.xlane.xlu0 %1986
    %v1988 = vsel %vm1852, %v1944, 0.0
    %1989 = vadd.xlane.f32.xlu0 %v1988
    %v1990 = vpop.xlane.xlu0 %1989
    %v1991 = vsel %vm1852, %v1946, 0.0
    %1992 = vadd.xlane.f32.xlu0 %v1991
    %v1993 = vpop.xlane.xlu0 %1992
    %v1994 = vsel %vm1852, %v1948, 0.0
    %1995 = vadd.xlane.f32.xlu0 %v1994
    %v1996 = vpop.xlane.xlu0 %1995
    %v1997 = vlog2.pop %v1951
    %v1998 = vmul.f32 %v1997, 0.6931472
    %v1999 = vlog2.pop %v1954
    %v2000 = vmul.f32 %v1999, 0.6931472
    %v2001 = vlog2.pop %v1957
    %v2002 = vmul.f32 %v2001, 0.6931472
    %v2003 = vlog2.pop %v1960
    %v2004 = vmul.f32 %v2003, 0.6931472
    %v2005 = vlog2.pop %v1963
    %v2006 = vmul.f32 %v2005, 0.6931472
    %v2007 = vlog2.pop %v1966
    %v2008 = vmul.f32 %v2007, 0.6931472
    %v2009 = vlog2.pop %v1969
    %v2010 = vmul.f32 %v2009, 0.6931472
    %v2011 = vlog2.pop %v1972
    %v2012 = vmul.f32 %v2011, 0.6931472
    %v2013 = vlog2.pop %v1975
    %v2014 = vmul.f32 %v2013, 0.6931472
    %v2015 = vlog2.pop %v1978
    %v2016 = vmul.f32 %v2015, 0.6931472
    %v2017 = vlog2.pop %v1981
    %v2018 = vmul.f32 %v2017, 0.6931472
    %v2019 = vlog2.pop %v1984
    %v2020 = vmul.f32 %v2019, 0.6931472
    %v2021 = vlog2.pop %v1987
    %v2022 = vmul.f32 %v2021, 0.6931472
    %v2023 = vlog2.pop %v1990
    %v2024 = vmul.f32 %v2023, 0.6931472
    %v2025 = vlog2.pop %v1993
    %v2026 = vmul.f32 %v2025, 0.6931472
    %v2027 = vlog2.pop %v1996
    %v2028 = vmul.f32 %v2027, 0.6931472
    %v2029 = vsub.f32 %v1901, %v1998
    %v2030 = vsub.f32 %v1902, %v2000
    %v2031 = vsub.f32 %v1903, %v2002
    %v2032 = vsub.f32 %v1904, %v2004
    %v2033 = vsub.f32 %v1905, %v2006
    %v2034 = vsub.f32 %v1906, %v2008
    %v2035 = vsub.f32 %v1907, %v2010
    %v2036 = vsub.f32 %v1908, %v2012
    %v2037 = vsub.f32 %v1909, %v2014
    %v2038 = vsub.f32 %v1910, %v2016
    %v2039 = vsub.f32 %v1911, %v2018
    %v2040 = vsub.f32 %v1912, %v2020
    %v2041 = vsub.f32 %v1913, %v2022
    %v2042 = vsub.f32 %v1914, %v2024
    %v2043 = vsub.f32 %v1915, %v2026
    %v2044 = vsub.f32 %v1916, %v2028
    %2045 = vst.msk [vmem:[%s5] sm:$0xff] %vm1852, %v2029
    %2046 = vst.msk [vmem:[%s5 + $0x8] sm:$0xff] %vm1852, %v2030
    %2047 = vst.msk [vmem:[%s5 + $0x10] sm:$0xff] %vm1852, %v2031
    %2048 = vst.msk [vmem:[%s5 + $0x18] sm:$0xff] %vm1852, %v2032
    %2049 = vst.msk [vmem:[%s5 + $0x20] sm:$0xff] %vm1852, %v2033
    %2050 = vst.msk [vmem:[%s5 + $0x28] sm:$0xff] %vm1852, %v2034
    %2051 = vst.msk [vmem:[%s5 + $0x30] sm:$0xff] %vm1852, %v2035
    %2052 = vst.msk [vmem:[%s5 + $0x38] sm:$0xff] %vm1852, %v2036
    %2053 = vst.msk [vmem:[%s5 + $0x40] sm:$0xff] %vm1852, %v2037
    %2054 = vst.msk [vmem:[%s5 + $0x48] sm:$0xff] %vm1852, %v2038
    %2055 = vst.msk [vmem:[%s5 + $0x50] sm:$0xff] %vm1852, %v2039
    %2056 = vst.msk [vmem:[%s5 + $0x58] sm:$0xff] %vm1852, %v2040
    %2057 = vst.msk [vmem:[%s5 + $0x60] sm:$0xff] %vm1852, %v2041
    %2058 = vst.msk [vmem:[%s5 + $0x68] sm:$0xff] %vm1852, %v2042
    %2059 = vst.msk [vmem:[%s5 + $0x70] sm:$0xff] %vm1852, %v2043
    %2060 = vst.msk [vmem:[%s5 + $0x78] sm:$0xff] %vm1852, %v2044
    // Predicated region
    $region26: #{mynet_forward.1} parent=1 // pred_check
      _
    $region27: #{mynet_forward.1} parent=1 // pred_check_branch
      %2062 = sbr.rel (0) target = $region29
    $region28: #{mynet_forward.1} parent=1 // pred_region
      _
    $region29: #{mynet_forward.1} parent=1 // pred_fallthru
      _
    // Predicated region
    $region30: #{mynet_forward.1} parent=1 // pred_check
      _
    $region31: #{mynet_forward.1} parent=1 // pred_check_branch
      %2064 = sbr.rel (0) target = $region33
    $region32: #{mynet_forward.1} parent=1 // pred_region
      _
    $region33: #{mynet_forward.1} parent=1 // pred_fallthru
      _
    %2065 = vsyncpa [#allocation3], 1

</llo_original>
